<compile_context>
chip_gen: v5e
topology: v5e:2x2
jax: 0.10.0
libtpu: 0.0.40
codegen_flags: <defaults>
</compile_context>

<pallas_src>
import jax
import jax.numpy as jnp
from jax import lax
from jax.experimental import pallas as pl
from jax.experimental.pallas import tpu as pltpu

# ------------------------- module-consistent config --------------------------
VOCAB = 32
DIM = 32                 # Rotator.dim
HIDDEN = 16              # Rotator.hidden_dim
HISTORY = 16             # history_dim (= hidden_dim by default)
HIPPO_DIM = 8            # Hippo c_dim
NUM_HIPPO_HEADS = 2
NUM_HEADS = 2            # lima heads
DEPTH = 2
ROTARY_DENOM = 0.5
M_VALUE = 1.0            # fix_max_value
MIN_PROP = 0.2           # min_proportion
HIST_IN = HISTORY + NUM_HIPPO_HEADS * HIPPO_DIM       # lima history_dim_in (=32)
HSIZE = NUM_HEADS * HISTORY                            # flattened history (=32)
CSIZE = NUM_HEADS * NUM_HIPPO_HEADS * HIPPO_DIM        # flattened hippo c  (=32)
STATE = HSIZE + CSIZE                                  # per-layer state lanes (=64)
OUT_LANES = 256                                        # lane-dense output slab
BATCH = 2
SEQ_LEN = 8
LN_EPS = 1e-5


# ------------------------------ fused kernel ---------------------------------
def rotator_kernel(data_ref, time_ref,                       # scalar prefetch (SMEM)
                   emb_ref, w_ref, rr_ref, cst_ref, istate_ref,   # VMEM inputs
                   out_ref,                                   # [1, B, 256] per step
                   state):                                    # VMEM scratch [depth,B,64]
    t = pl.program_id(0)
    depth, batch, _ = istate_ref.shape
    vocab = emb_ref.shape[0]

    # ---- carry recurrent state in VMEM scratch across grid steps ------------
    @pl.when(t == 0)
    def _():
        state[...] = istate_ref[...]

    inv_t = 1.0 / time_ref[t]                                 # SMEM scalar read

    # ---- embedding gather: one one-hot matmul against the [V,96] table ------
    iota_v = lax.broadcasted_iota(jnp.int32, (1, vocab), 1)
    onehot = jnp.concatenate(
        [(iota_v == data_ref[t, b]).astype(jnp.float32) for b in range(batch)],
        axis=0)                                               # [B, V]
    emb = jnp.dot(onehot, emb_ref[...], preferred_element_type=jnp.float32)  # [B,96]
    theta = emb[:, 0:DIM]
    emb_r = emb[:, DIM:2 * DIM]
    emb_i = emb[:, 2 * DIM:3 * DIM]

    accum = jnp.zeros((batch, DIM), jnp.float32)
    new_states = []
    for l in range(depth):                                    # static unroll
        st = state[l]                                         # [B, 64] = hist|c
        c_l = st[:, HSIZE:STATE]                              # [B, 32]
        cst = cst_ref[l]                                      # [8, 32] constants

        # fc_in: single K=96 matmul (theta rows of both heads pre-summed)
        x = theta - accum
        xin = jnp.concatenate([x, st], axis=-1)               # [B, 96] = x|hist|c
        h = jnp.dot(xin, w_ref[l, 0:96, :],
                    preferred_element_type=jnp.float32) + cst[0:1, :]

        # lima activation with cos(2h) folded via double-angle identity
        ch = jnp.cos(h)
        o = cst[1:2, :] + cst[2:3, :] * ch + cst[3:4, :] * (ch * ch)

        # per-head Theta einsum as one block-diagonal matmul
        raw = jnp.dot(o, w_ref[l, 96:128, :], preferred_element_type=jnp.float32)

        # merged matmul: [raw | raw^2] @ [[avg, W_out, 0],[0,0,avg]]
        lhs = jnp.concatenate([raw, raw * raw], axis=-1)      # [B, 64]
        mo = jnp.dot(lhs, rr_ref[l], preferred_element_type=jnp.float32)  # [B, 96]
        mean = mo[:, 0:32]
        outc = mo[:, 32:64]
        msq = mo[:, 64:96]
        var = msq - mean * mean                               # biased variance
        nh = (raw - mean) * lax.rsqrt(var + LN_EPS) * cst[4:5, :]   # LN (no bias)

        # Hippo fused: nc = c + ( [c | nh] @ [[-A^T_big],[W_f]] + b_f ) / t
        hin = jnp.concatenate([c_l, nh], axis=-1)             # [B, 64]
        nc = c_l + inv_t * (jnp.dot(hin, w_ref[l, 128:192, :],
                                    preferred_element_type=jnp.float32)
                            + cst[6:7, :])

        ns = jnp.concatenate([nh, nc], axis=-1)               # [B, 64]
        state[l] = ns
        new_states.append(ns)

        # fc_out + head-sum (consumes pre-LayerNorm raw, as in the reference)
        accum = accum + outc + cst[5:6, :]

    # ---- Output predictor: rotate the complex word embedding ----------------
    time_angle = cst_ref[0, 7:8, :]                           # parameter-only
    total = time_angle + accum + theta
    cr = jnp.cos(total)
    si = jnp.sin(total)
    out_r = emb_r * cr - emb_i * si
    out_i = emb_r * si + emb_i * cr

    # single lane-dense (256-lane) store: outr|outi|state(l0)|state(l1)|pad
    pad = jnp.zeros((batch, OUT_LANES - 2 * DIM - depth * STATE), jnp.float32)
    out_ref[0] = jnp.concatenate([out_r, out_i] + new_states + [pad], axis=-1)


# ------------------------------ wrapper ---------------------------------------
def rotator_forward_seq(fused, data_seq, times, histories, hippo_c):
    """Runs T recurrent steps in one pallas_call.

    data_seq: [T, B] int token ids.  times: [T] float (the `time` scalar per step).
    Returns (predicts [T, B, DIM] complex, final state dict) — step s is exactly
    the reference forward(data_seq[s], times[s], state_{s-1}).
    """
    T, B = data_seq.shape
    depth = len(histories)

    hist_all = jnp.stack([h.reshape(B, -1) for h in histories]).astype(jnp.float32)
    c_all = jnp.stack([c.reshape(B, -1) for c in hippo_c]).astype(jnp.float32)
    init_state = jnp.concatenate([hist_all, c_all], axis=-1)         # [depth, B, 64]

    const3 = lambda t, d, tm: (0, 0, 0)
    grid_spec = pltpu.PrefetchScalarGridSpec(
        num_scalar_prefetch=2,
        grid=(T,),
        in_specs=[
            pl.BlockSpec((VOCAB, 3 * DIM), lambda t, d, tm: (0, 0)),  # emb table
            pl.BlockSpec((depth, 192, 32), const3),                   # weight slab
            pl.BlockSpec((depth, 64, 96), const3),                    # merged raw RHS
            pl.BlockSpec((depth, 8, 32), const3),                     # bias/const slab
            pl.BlockSpec((depth, B, STATE), const3),                  # initial state
        ],
        out_specs=pl.BlockSpec((1, B, OUT_LANES), lambda t, d, tm: (t, 0, 0)),
        scratch_shapes=[pltpu.VMEM((depth, B, STATE), jnp.float32)],
    )

    out = pl.pallas_call(
        rotator_kernel,
        out_shape=jax.ShapeDtypeStruct((T, B, OUT_LANES), jnp.float32),
        grid_spec=grid_spec,
        compiler_params=pltpu.CompilerParams(dimension_semantics=("arbitrary",)),
    )(data_seq.astype(jnp.int32), times.astype(jnp.float32),
      fused["emb_tbl"], fused["w_slab"], fused["raw_rhs"], fused["const_slab"],
      init_state)

    # glue: complex assembly + final-state slicing (no complex dtype in Pallas)
    predicts = lax.complex(out[:, :, 0:DIM], out[:, :, DIM:2 * DIM])
    last = out[T - 1]
    new_hist = [last[:, 2 * DIM + l * STATE: 2 * DIM + l * STATE + HSIZE]
                .reshape(B, NUM_HEADS, HISTORY) for l in range(depth)]
    new_c = [last[:, 2 * DIM + l * STATE + HSIZE: 2 * DIM + (l + 1) * STATE]
             .reshape(B, NUM_HEADS, NUM_HIPPO_HEADS * HIPPO_DIM) for l in range(depth)]
    return predicts, {"histories": new_hist, "hippo_c": new_c}


# -------------------- parameter-only precomputation (once) --------------------
def build_fused_params(params):
    H, hidden, hist_out = NUM_HEADS, HIDDEN, HISTORY
    Hh, cdim, dim = NUM_HIPPO_HEADS, HIPPO_DIM, DIM
    per = dim + HIST_IN                                     # per-head fc_in features

    AT = params["hippos"][0]["AT"]
    AT_big = jnp.kron(jnp.eye(H * Hh, dtype=jnp.float32), AT)              # [32,32]
    avg_blk = jnp.kron(jnp.eye(H, dtype=jnp.float32),
                       jnp.full((hist_out, hist_out), 1.0 / hist_out, jnp.float32))
    lrd = params["log_rotary_denom"][0, 0]
    time_angle = jnp.exp(-lrd * jnp.arange(dim, dtype=jnp.float32) / dim)[None, :]

    w_slab, raw_rhs, const_slab = [], [], []
    for l in range(DEPTH):
        lp, hp = params["limas"][l], params["hippos"][l]

        # fc_in reorganized so xin = [x, hist_flat, c_flat] (theta rows summed)
        W = lp["W_in"]                                       # [H*per, H*hidden]
        W_x = sum(W[hh * per: hh * per + dim] for hh in range(H))
        W_h = jnp.concatenate(
            [W[hh * per + dim: hh * per + dim + hist_out] for hh in range(H)], 0)
        W_c = jnp.concatenate(
            [W[hh * per + dim + hist_out: (hh + 1) * per] for hh in range(H)], 0)
        w_in = jnp.concatenate([W_x, W_h, W_c], 0)           # [96, 32]

        # per-head Theta as one block-diagonal matrix
        Tb = jnp.zeros((H * hidden, H * hist_out), jnp.float32)
        for hh in range(H):
            Tb = Tb.at[hh * hidden:(hh + 1) * hidden,
                       hh * hist_out:(hh + 1) * hist_out].set(lp["Theta"][hh])

        # fc_out with the head-sum folded in
        w_out = sum(lp["W_out"][:, hh * dim:(hh + 1) * dim] for hh in range(H))
        b_out = sum(lp["b_out"][:, hh * dim:(hh + 1) * dim] for hh in range(H))

        # Hippo f-term ((Lf(h) ⊗ Bvec)) as one block-diag matrix; fuse with -A^T
        E = jnp.zeros((Hh, Hh * cdim), jnp.float32)
        for j in range(Hh):
            E = E.at[j, j * cdim:(j + 1) * cdim].set(hp["Bvec"][0])
        LfE = hp["Lf_W"] @ E                                 # [16, 16]
        Wf = jnp.zeros((H * hist_out, H * Hh * cdim), jnp.float32)
        for hh in range(H):
            Wf = Wf.at[hh * hist_out:(hh + 1) * hist_out,
                       hh * Hh * cdim:(hh + 1) * Hh * cdim].set(LfE)
        hippo_rhs = jnp.concatenate([-AT_big, Wf], axis=0)   # [64, 32]
        b_f = jnp.tile(hp["Lf_b"] @ E, (1, H))               # [1, 32]

        # weight slab: rows 0:96 fc_in | 96:128 Theta | 128:192 hippo
        w_slab.append(jnp.concatenate([w_in, Tb, hippo_rhs], axis=0))   # [192, 32]

        # merged RHS: [raw | raw^2] @ [[avg, W_out, 0],[0, 0, avg]]
        top = jnp.concatenate([avg_blk, w_out, jnp.zeros((32, 32), jnp.float32)], 1)
        bot = jnp.concatenate([jnp.zeros((32, 64), jnp.float32), avg_blk], 1)
        raw_rhs.append(jnp.concatenate([top, bot], axis=0))             # [64, 96]

        # lima activation constants (sigmoid/exp hoisted; cos(2h) folded)
        b_a = (jax.nn.sigmoid(lp["lima_shape"]) - 0.5) / 2.0
        scale = (M_VALUE * (1.0 - MIN_PROP)
                 / (2.0 * (jnp.exp(lp["proportion"]) + 1.0)))
        a_add = (M_VALUE + scale * (-1.0 - 2.0 * b_a)).reshape(1, -1)
        a_cos = scale.reshape(1, -1)
        a_c2 = (2.0 * scale * b_a).reshape(1, -1)

        const_slab.append(jnp.concatenate([
            lp["b_in"], a_add, a_cos, a_c2,
            jnp.tile(lp["ln_w"], (1, H)), b_out, b_f,
            time_angle if l == 0 else jnp.zeros((1, H * hidden), jnp.float32),
        ], axis=0))                                                     # [8, 32]

    return {
        "emb_tbl": jnp.concatenate([params["angle_emb"], params["emb_real"],
                                    params["emb_imag"]], axis=1),        # [V, 96]
        "w_slab": jnp.stack(w_slab),                                     # [D,192,32]
        "raw_rhs": jnp.stack(raw_rhs),                                   # [D,64,96]
        "const_slab": jnp.stack(const_slab),                             # [D,8,32]
    }


# -------------------------- deterministic parameters ---------------------------
def init_params(key):
    ks = jax.random.split(key, 3 + DEPTH * 10)
    it = iter(ks)
    nk = lambda: next(it)

    params = {
        "angle_emb": jax.random.normal(nk(), (VOCAB, DIM), jnp.float32),
        "emb_real": jax.random.normal(nk(), (VOCAB, DIM), jnp.float32),
        "emb_imag": jax.random.normal(nk(), (VOCAB, DIM), jnp.float32),
        "log_rotary_denom": jnp.array([[ROTARY_DENOM]], jnp.float32),
    }

    # fixed Hippo matrices (from the Hippo.__init__ formula)
    q = jnp.arange(HIPPO_DIM, dtype=jnp.float32)
    Bv = jnp.sqrt(2.0 * q + 1.0)
    A = jnp.tril(Bv[None, :] * Bv[:, None], k=-1) + jnp.diag(q + 1.0)
    AT = A.T

    in_f = NUM_HEADS * (DIM + HIST_IN)
    out_f_in = NUM_HEADS * HIDDEN
    in_f_out = NUM_HEADS * HISTORY
    out_f_out = NUM_HEADS * DIM

    limas, hippos, init_hist = [], [], []
    for _ in range(DEPTH):
        limas.append({
            "W_in": jax.random.normal(nk(), (in_f, out_f_in), jnp.float32)
                    / jnp.sqrt(float(in_f)),
            "b_in": jax.random.uniform(nk(), (1, out_f_in), jnp.float32, -0.05, 0.05),
            "proportion": jax.random.uniform(nk(), (NUM_HEADS, HIDDEN), jnp.float32),
            "lima_shape": jax.random.uniform(nk(), (NUM_HEADS, HIDDEN), jnp.float32),
            "Theta": jax.random.uniform(nk(), (NUM_HEADS, HIDDEN, HISTORY),
                                        jnp.float32) * 2.0 * jnp.pi - jnp.pi,
            "W_out": jax.random.normal(nk(), (in_f_out, out_f_out), jnp.float32)
                     / jnp.sqrt(float(in_f_out)),
            "b_out": jax.random.uniform(nk(), (1, out_f_out), jnp.float32, -0.05, 0.05),
            "ln_w": jnp.ones((1, HISTORY), jnp.float32),
        })
        hippos.append({
            "AT": AT,
            "Bvec": Bv[None, :],
            "Lf_W": jax.random.normal(nk(), (HISTORY, NUM_HIPPO_HEADS), jnp.float32)
                    / jnp.sqrt(float(HISTORY)),
            "Lf_b": jax.random.uniform(nk(), (1, NUM_HIPPO_HEADS), jnp.float32,
                                       -0.05, 0.05),
        })
        init_hist.append(jax.random.normal(nk(), (1, NUM_HEADS, HIDDEN), jnp.float32))

    params["limas"] = limas
    params["hippos"] = hippos
    params["init_hist"] = init_hist
    return params


if __name__ == "__main__":
    key = jax.random.PRNGKey(0)
    params = init_params(key)
    fused = build_fused_params(params)            # parameter-only precompute, once

    data_seq = jax.random.randint(jax.random.fold_in(key, 999),
                                  (SEQ_LEN, BATCH), 0, VOCAB)
    times = 3.0 + jnp.arange(SEQ_LEN, dtype=jnp.float32)      # per-step `time`
    histories = [jnp.broadcast_to(params["init_hist"][l],
                                  (BATCH, NUM_HEADS, HIDDEN)).astype(jnp.float32)
                 for l in range(DEPTH)]
    hippo_c = [jnp.zeros((BATCH, NUM_HEADS, NUM_HIPPO_HEADS * HIPPO_DIM),
                         jnp.float32) for _ in range(DEPTH)]

    fwd = jax.jit(rotator_forward_seq)
    predicts, state = fwd(fused, data_seq, times, histories, hippo_c)
    jax.block_until_ready(predicts)
    for arr in state["histories"] + state["hippo_c"]:
        jax.block_until_ready(arr)
    print("KERNEL_OK")
</pallas_src>

<mosaic_0001>
module attributes {stable_mosaic.version = 11 : i64} {
  func.func @rotator_kernel(%arg0: i32, %arg1: memref<8x2xi32, #tpu.memory_space<smem>>, %arg2: memref<8xf32, #tpu.memory_space<smem>>, %arg3: memref<32x96xf32, #tpu.memory_space<vmem>>, %arg4: memref<2x192x32xf32, #tpu.memory_space<vmem>>, %arg5: memref<2x64x96xf32, #tpu.memory_space<vmem>>, %arg6: memref<2x8x32xf32, #tpu.memory_space<vmem>>, %arg7: memref<2x2x64xf32, #tpu.memory_space<vmem>>, %arg8: memref<1x2x256xf32, #tpu.memory_space<vmem>>, %arg9: memref<2x2x64xf32, #tpu.memory_space<vmem>>) attributes {dimension_semantics = [#tpu.dimension_semantics<arbitrary>], iteration_bounds = array<i64: 8>, scalar_prefetch = 2 : i64, scratch_operands = 1 : i64, tpu.core_type = #tpu.core_type<tc>, window_params = [{pipeline_mode = #tpu.pipeline_mode<synchronous>, transform_indices = @transform_0, window_bounds = array<i64: 32, 96>}, {pipeline_mode = #tpu.pipeline_mode<synchronous>, transform_indices = @transform_1, window_bounds = array<i64: 2, 192, 32>}, {pipeline_mode = #tpu.pipeline_mode<synchronous>, transform_indices = @transform_2, window_bounds = array<i64: 2, 64, 96>}, {pipeline_mode = #tpu.pipeline_mode<synchronous>, transform_indices = @transform_3, window_bounds = array<i64: 2, 8, 32>}, {pipeline_mode = #tpu.pipeline_mode<synchronous>, transform_indices = @transform_4, window_bounds = array<i64: 2, 2, 64>}, {transform_indices = @transform_5, window_bounds = array<i64: 1, 2, 256>}]} {
    %c0_i32 = arith.constant 0 : i32
    %0 = arith.cmpi eq, %arg0, %c0_i32 : i32
    %1 = arith.extui %0 : i1 to i32
    %c0_i32_0 = arith.constant 0 : i32
    %2 = arith.cmpi ne, %1, %c0_i32_0 : i32
    scf.if %2 {
      %c0_61 = arith.constant 0 : index
      %c0_62 = arith.constant 0 : index
      %c0_63 = arith.constant 0 : index
      %172 = vector.load %arg7[%c0_61, %c0_62, %c0_63] : memref<2x2x64xf32, #tpu.memory_space<vmem>>, vector<2x2x64xf32>
      %c0_64 = arith.constant 0 : index
      %c0_65 = arith.constant 0 : index
      %c0_66 = arith.constant 0 : index
      %173 = vector.load %arg9[%c0_64, %c0_65, %c0_66] : memref<2x2x64xf32, #tpu.memory_space<vmem>>, vector<2x2x64xf32>
      tpu.vector_store %arg9[%c0_64, %c0_65, %c0_66], %172 {strides = array<i32>} : memref<2x2x64xf32, #tpu.memory_space<vmem>>, vector<2x2x64xf32>,
    } else {
    }
    %3 = arith.index_cast %arg0 : i32 to index
    %4 = memref.load %arg2[%3] : memref<8xf32, #tpu.memory_space<smem>>
    %cst = arith.constant 1.000000e+00 : f32
    %5 = arith.divf %cst, %4 : f32
    %6 = tpu.iota {dimensions = array<i32: 1>} : vector<1x32xi32>
    %7 = arith.index_cast %arg0 : i32 to index
    %c0 = arith.constant 0 : index
    %8 = memref.load %arg1[%7, %c0] : memref<8x2xi32, #tpu.memory_space<smem>>
    %9 = vector.broadcast %8 : i32 to vector<1x32xi32>
    %10 = arith.cmpi eq, %6, %9 : vector<1x32xi32>
    %11 = arith.extui %10 : vector<1x32xi1> to vector<1x32xi32>
    %12 = arith.sitofp %11 : vector<1x32xi32> to vector<1x32xf32>
    %13 = arith.index_cast %arg0 : i32 to index
    %c1 = arith.constant 1 : index
    %14 = memref.load %arg1[%13, %c1] : memref<8x2xi32, #tpu.memory_space<smem>>
    %15 = vector.broadcast %14 : i32 to vector<1x32xi32>
    %16 = arith.cmpi eq, %6, %15 : vector<1x32xi32>
    %17 = arith.extui %16 : vector<1x32xi1> to vector<1x32xi32>
    %18 = arith.sitofp %17 : vector<1x32xi32> to vector<1x32xf32>
    %19 = tpu.concatenate %12, %18 in 0 : vector<1x32xf32>, vector<1x32xf32> -> vector<2x32xf32>
    %c0_1 = arith.constant 0 : index
    %c0_2 = arith.constant 0 : index
    %20 = vector.load %arg3[%c0_1, %c0_2] : memref<32x96xf32, #tpu.memory_space<vmem>>, vector<32x96xf32>
    %cst_3 = arith.constant dense<0.000000e+00> : vector<2x96xf32>
    %21 = tpu.matmul %19, %20, %cst_3 {dimension_numbers = #tpu.dot_dimension_numbers<[1], [0], [0], [1], [0, 0, 1, 1], [], []>} : vector<2x32xf32>, vector<32x96xf32>, vector<2x96xf32> -> vector<2x96xf32>
    %22 = vector.extract_strided_slice %21 {offsets = [0, 0], sizes = [2, 32], strides = [1, 1]} : vector<2x96xf32> to vector<2x32xf32>
    %23 = vector.extract_strided_slice %21 {offsets = [0, 32], sizes = [2, 32], strides = [1, 1]} : vector<2x96xf32> to vector<2x32xf32>
    %24 = vector.extract_strided_slice %21 {offsets = [0, 64], sizes = [2, 32], strides = [1, 1]} : vector<2x96xf32> to vector<2x32xf32>
    %cst_4 = arith.constant 0.000000e+00 : f32
    %25 = vector.broadcast %cst_4 : f32 to vector<2x32xf32>
    %c0_5 = arith.constant 0 : index
    %c0_6 = arith.constant 0 : index
    %c0_7 = arith.constant 0 : index
    %26 = vector.load %arg9[%c0_5, %c0_6, %c0_7] : memref<2x2x64xf32, #tpu.memory_space<vmem>>, vector<1x2x64xf32>
    %27 = vector.shape_cast %26 : vector<1x2x64xf32> to vector<2x64xf32>
    %28 = vector.extract_strided_slice %27 {offsets = [0, 32], sizes = [2, 32], strides = [1, 1]} : vector<2x64xf32> to vector<2x32xf32>
    %c0_8 = arith.constant 0 : index
    %c0_9 = arith.constant 0 : index
    %c0_10 = arith.constant 0 : index
    %29 = vector.load %arg6[%c0_8, %c0_9, %c0_10] : memref<2x8x32xf32, #tpu.memory_space<vmem>>, vector<1x8x32xf32>
    %30 = vector.shape_cast %29 : vector<1x8x32xf32> to vector<8x32xf32>
    %31 = arith.subf %22, %25 : vector<2x32xf32>
    %32 = tpu.concatenate %31, %27 in 1 : vector<2x32xf32>, vector<2x64xf32> -> vector<2x96xf32>
    %c0_11 = arith.constant 0 : index
    %c0_12 = arith.constant 0 : index
    %c0_13 = arith.constant 0 : index
    %33 = vector.load %arg4[%c0_11, %c0_12, %c0_13] : memref<2x192x32xf32, #tpu.memory_space<vmem>>, vector<1x96x32xf32>
    %34 = vector.shape_cast %33 : vector<1x96x32xf32> to vector<96x32xf32>
    %cst_14 = arith.constant dense<0.000000e+00> : vector<2x32xf32>
    %35 = tpu.matmul %32, %34, %cst_14 {dimension_numbers = #tpu.dot_dimension_numbers<[1], [0], [0], [1], [0, 0, 1, 1], [], []>} : vector<2x96xf32>, vector<96x32xf32>, vector<2x32xf32> -> vector<2x32xf32>
    %36 = vector.extract_strided_slice %30 {offsets = [0, 0], sizes = [1, 32], strides = [1, 1]} : vector<8x32xf32> to vector<1x32xf32>
    %37 = vector.broadcast %36 : vector<1x32xf32> to vector<2x32xf32>
    %38 = arith.addf %35, %37 : vector<2x32xf32>
    %39 = math.cos %38 : vector<2x32xf32>
    %40 = vector.extract_strided_slice %30 {offsets = [1, 0], sizes = [1, 32], strides = [1, 1]} : vector<8x32xf32> to vector<1x32xf32>
    %41 = vector.extract_strided_slice %30 {offsets = [2, 0], sizes = [1, 32], strides = [1, 1]} : vector<8x32xf32> to vector<1x32xf32>
    %42 = vector.broadcast %41 : vector<1x32xf32> to vector<2x32xf32>
    %43 = arith.mulf %42, %39 : vector<2x32xf32>
    %44 = vector.broadcast %40 : vector<1x32xf32> to vector<2x32xf32>
    %45 = arith.addf %44, %43 : vector<2x32xf32>
    %46 = vector.extract_strided_slice %30 {offsets = [3, 0], sizes = [1, 32], strides = [1, 1]} : vector<8x32xf32> to vector<1x32xf32>
    %47 = arith.mulf %39, %39 : vector<2x32xf32>
    %48 = vector.broadcast %46 : vector<1x32xf32> to vector<2x32xf32>
    %49 = arith.mulf %48, %47 : vector<2x32xf32>
    %50 = arith.addf %45, %49 : vector<2x32xf32>
    %c0_15 = arith.constant 0 : index
    %c96 = arith.constant 96 : index
    %c0_16 = arith.constant 0 : index
    %51 = vector.load %arg4[%c0_15, %c96, %c0_16] : memref<2x192x32xf32, #tpu.memory_space<vmem>>, vector<1x32x32xf32>
    %52 = vector.shape_cast %51 : vector<1x32x32xf32> to vector<32x32xf32>
    %cst_17 = arith.constant dense<0.000000e+00> : vector<2x32xf32>
    %53 = tpu.matmul %50, %52, %cst_17 {dimension_numbers = #tpu.dot_dimension_numbers<[1], [0], [0], [1], [0, 0, 1, 1], [], []>} : vector<2x32xf32>, vector<32x32xf32>, vector<2x32xf32> -> vector<2x32xf32>
    %54 = arith.mulf %53, %53 : vector<2x32xf32>
    %55 = tpu.concatenate %53, %54 in 1 : vector<2x32xf32>, vector<2x32xf32> -> vector<2x64xf32>
    %c0_18 = arith.constant 0 : index
    %c0_19 = arith.constant 0 : index
    %c0_20 = arith.constant 0 : index
    %56 = vector.load %arg5[%c0_18, %c0_19, %c0_20] : memref<2x64x96xf32, #tpu.memory_space<vmem>>, vector<1x64x96xf32>
    %57 = vector.shape_cast %56 : vector<1x64x96xf32> to vector<64x96xf32>
    %cst_21 = arith.constant dense<0.000000e+00> : vector<2x96xf32>
    %58 = tpu.matmul %55, %57, %cst_21 {dimension_numbers = #tpu.dot_dimension_numbers<[1], [0], [0], [1], [0, 0, 1, 1], [], []>} : vector<2x64xf32>, vector<64x96xf32>, vector<2x96xf32> -> vector<2x96xf32>
    %59 = vector.extract_strided_slice %58 {offsets = [0, 0], sizes = [2, 32], strides = [1, 1]} : vector<2x96xf32> to vector<2x32xf32>
    %60 = vector.extract_strided_slice %58 {offsets = [0, 32], sizes = [2, 32], strides = [1, 1]} : vector<2x96xf32> to vector<2x32xf32>
    %61 = vector.extract_strided_slice %58 {offsets = [0, 64], sizes = [2, 32], strides = [1, 1]} : vector<2x96xf32> to vector<2x32xf32>
    %62 = arith.mulf %59, %59 : vector<2x32xf32>
    %63 = arith.subf %61, %62 : vector<2x32xf32>
    %64 = arith.subf %53, %59 : vector<2x32xf32>
    %cst_22 = arith.constant 9.99999974E-6 : f32
    %65 = vector.broadcast %cst_22 : f32 to vector<2x32xf32>
    %66 = arith.addf %63, %65 : vector<2x32xf32>
    %67 = math.rsqrt %66 : vector<2x32xf32>
    %68 = arith.mulf %64, %67 : vector<2x32xf32>
    %69 = vector.extract_strided_slice %30 {offsets = [4, 0], sizes = [1, 32], strides = [1, 1]} : vector<8x32xf32> to vector<1x32xf32>
    %70 = vector.broadcast %69 : vector<1x32xf32> to vector<2x32xf32>
    %71 = arith.mulf %68, %70 : vector<2x32xf32>
    %72 = tpu.concatenate %28, %71 in 1 : vector<2x32xf32>, vector<2x32xf32> -> vector<2x64xf32>
    %c0_23 = arith.constant 0 : index
    %c128 = arith.constant 128 : index
    %c0_24 = arith.constant 0 : index
    %73 = vector.load %arg4[%c0_23, %c128, %c0_24] : memref<2x192x32xf32, #tpu.memory_space<vmem>>, vector<1x64x32xf32>
    %74 = vector.shape_cast %73 : vector<1x64x32xf32> to vector<64x32xf32>
    %cst_25 = arith.constant dense<0.000000e+00> : vector<2x32xf32>
    %75 = tpu.matmul %72, %74, %cst_25 {dimension_numbers = #tpu.dot_dimension_numbers<[1], [0], [0], [1], [0, 0, 1, 1], [], []>} : vector<2x64xf32>, vector<64x32xf32>, vector<2x32xf32> -> vector<2x32xf32>
    %76 = vector.extract_strided_slice %30 {offsets = [6, 0], sizes = [1, 32], strides = [1, 1]} : vector<8x32xf32> to vector<1x32xf32>
    %77 = vector.broadcast %76 : vector<1x32xf32> to vector<2x32xf32>
    %78 = arith.addf %75, %77 : vector<2x32xf32>
    %79 = vector.broadcast %5 : f32 to vector<2x32xf32>
    %80 = arith.mulf %79, %78 : vector<2x32xf32>
    %81 = arith.addf %28, %80 : vector<2x32xf32>
    %82 = tpu.concatenate %71, %81 in 1 : vector<2x32xf32>, vector<2x32xf32> -> vector<2x64xf32>
    %c0_26 = arith.constant 0 : index
    %c0_27 = arith.constant 0 : index
    %c0_28 = arith.constant 0 : index
    %83 = vector.load %arg9[%c0_26, %c0_27, %c0_28] : memref<2x2x64xf32, #tpu.memory_space<vmem>>, vector<1x2x64xf32>
    %84 = vector.shape_cast %83 : vector<1x2x64xf32> to vector<2x64xf32>
    %85 = vector.shape_cast %82 : vector<2x64xf32> to vector<1x2x64xf32>
    tpu.vector_store %arg9[%c0_26, %c0_27, %c0_28], %85 {strides = array<i32>} : memref<2x2x64xf32, #tpu.memory_space<vmem>>, vector<1x2x64xf32>,
    %86 = arith.addf %25, %60 : vector<2x32xf32>
    %87 = vector.extract_strided_slice %30 {offsets = [5, 0], sizes = [1, 32], strides = [1, 1]} : vector<8x32xf32> to vector<1x32xf32>
    %88 = vector.broadcast %87 : vector<1x32xf32> to vector<2x32xf32>
    %89 = arith.addf %86, %88 : vector<2x32xf32>
    %c1_29 = arith.constant 1 : index
    %c0_30 = arith.constant 0 : index
    %c0_31 = arith.constant 0 : index
    %90 = vector.load %arg9[%c1_29, %c0_30, %c0_31] : memref<2x2x64xf32, #tpu.memory_space<vmem>>, vector<1x2x64xf32>
    %91 = vector.shape_cast %90 : vector<1x2x64xf32> to vector<2x64xf32>
    %92 = vector.extract_strided_slice %91 {offsets = [0, 32], sizes = [2, 32], strides = [1, 1]} : vector<2x64xf32> to vector<2x32xf32>
    %c1_32 = arith.constant 1 : index
    %c0_33 = arith.constant 0 : index
    %c0_34 = arith.constant 0 : index
    %93 = vector.load %arg6[%c1_32, %c0_33, %c0_34] : memref<2x8x32xf32, #tpu.memory_space<vmem>>, vector<1x8x32xf32>
    %94 = vector.shape_cast %93 : vector<1x8x32xf32> to vector<8x32xf32>
    %95 = arith.subf %22, %89 : vector<2x32xf32>
    %96 = tpu.concatenate %95, %91 in 1 : vector<2x32xf32>, vector<2x64xf32> -> vector<2x96xf32>
    %c1_35 = arith.constant 1 : index
    %c0_36 = arith.constant 0 : index
    %c0_37 = arith.constant 0 : index
    %97 = vector.load %arg4[%c1_35, %c0_36, %c0_37] : memref<2x192x32xf32, #tpu.memory_space<vmem>>, vector<1x96x32xf32>
    %98 = vector.shape_cast %97 : vector<1x96x32xf32> to vector<96x32xf32>
    %cst_38 = arith.constant dense<0.000000e+00> : vector<2x32xf32>
    %99 = tpu.matmul %96, %98, %cst_38 {dimension_numbers = #tpu.dot_dimension_numbers<[1], [0], [0], [1], [0, 0, 1, 1], [], []>} : vector<2x96xf32>, vector<96x32xf32>, vector<2x32xf32> -> vector<2x32xf32>
    %100 = vector.extract_strided_slice %94 {offsets = [0, 0], sizes = [1, 32], strides = [1, 1]} : vector<8x32xf32> to vector<1x32xf32>
    %101 = vector.broadcast %100 : vector<1x32xf32> to vector<2x32xf32>
    %102 = arith.addf %99, %101 : vector<2x32xf32>
    %103 = math.cos %102 : vector<2x32xf32>
    %104 = vector.extract_strided_slice %94 {offsets = [1, 0], sizes = [1, 32], strides = [1, 1]} : vector<8x32xf32> to vector<1x32xf32>
    %105 = vector.extract_strided_slice %94 {offsets = [2, 0], sizes = [1, 32], strides = [1, 1]} : vector<8x32xf32> to vector<1x32xf32>
    %106 = vector.broadcast %105 : vector<1x32xf32> to vector<2x32xf32>
    %107 = arith.mulf %106, %103 : vector<2x32xf32>
    %108 = vector.broadcast %104 : vector<1x32xf32> to vector<2x32xf32>
    %109 = arith.addf %108, %107 : vector<2x32xf32>
    %110 = vector.extract_strided_slice %94 {offsets = [3, 0], sizes = [1, 32], strides = [1, 1]} : vector<8x32xf32> to vector<1x32xf32>
    %111 = arith.mulf %103, %103 : vector<2x32xf32>
    %112 = vector.broadcast %110 : vector<1x32xf32> to vector<2x32xf32>
    %113 = arith.mulf %112, %111 : vector<2x32xf32>
    %114 = arith.addf %109, %113 : vector<2x32xf32>
    %c1_39 = arith.constant 1 : index
    %c96_40 = arith.constant 96 : index
    %c0_41 = arith.constant 0 : index
    %115 = vector.load %arg4[%c1_39, %c96_40, %c0_41] : memref<2x192x32xf32, #tpu.memory_space<vmem>>, vector<1x32x32xf32>
    %116 = vector.shape_cast %115 : vector<1x32x32xf32> to vector<32x32xf32>
    %cst_42 = arith.constant dense<0.000000e+00> : vector<2x32xf32>
    %117 = tpu.matmul %114, %116, %cst_42 {dimension_numbers = #tpu.dot_dimension_numbers<[1], [0], [0], [1], [0, 0, 1, 1], [], []>} : vector<2x32xf32>, vector<32x32xf32>, vector<2x32xf32> -> vector<2x32xf32>
    %118 = arith.mulf %117, %117 : vector<2x32xf32>
    %119 = tpu.concatenate %117, %118 in 1 : vector<2x32xf32>, vector<2x32xf32> -> vector<2x64xf32>
    %c1_43 = arith.constant 1 : index
    %c0_44 = arith.constant 0 : index
    %c0_45 = arith.constant 0 : index
    %120 = vector.load %arg5[%c1_43, %c0_44, %c0_45] : memref<2x64x96xf32, #tpu.memory_space<vmem>>, vector<1x64x96xf32>
    %121 = vector.shape_cast %120 : vector<1x64x96xf32> to vector<64x96xf32>
    %cst_46 = arith.constant dense<0.000000e+00> : vector<2x96xf32>
    %122 = tpu.matmul %119, %121, %cst_46 {dimension_numbers = #tpu.dot_dimension_numbers<[1], [0], [0], [1], [0, 0, 1, 1], [], []>} : vector<2x64xf32>, vector<64x96xf32>, vector<2x96xf32> -> vector<2x96xf32>
    %123 = vector.extract_strided_slice %122 {offsets = [0, 0], sizes = [2, 32], strides = [1, 1]} : vector<2x96xf32> to vector<2x32xf32>
    %124 = vector.extract_strided_slice %122 {offsets = [0, 32], sizes = [2, 32], strides = [1, 1]} : vector<2x96xf32> to vector<2x32xf32>
    %125 = vector.extract_strided_slice %122 {offsets = [0, 64], sizes = [2, 32], strides = [1, 1]} : vector<2x96xf32> to vector<2x32xf32>
    %126 = arith.mulf %123, %123 : vector<2x32xf32>
    %127 = arith.subf %125, %126 : vector<2x32xf32>
    %128 = arith.subf %117, %123 : vector<2x32xf32>
    %cst_47 = arith.constant 9.99999974E-6 : f32
    %129 = vector.broadcast %cst_47 : f32 to vector<2x32xf32>
    %130 = arith.addf %127, %129 : vector<2x32xf32>
    %131 = math.rsqrt %130 : vector<2x32xf32>
    %132 = arith.mulf %128, %131 : vector<2x32xf32>
    %133 = vector.extract_strided_slice %94 {offsets = [4, 0], sizes = [1, 32], strides = [1, 1]} : vector<8x32xf32> to vector<1x32xf32>
    %134 = vector.broadcast %133 : vector<1x32xf32> to vector<2x32xf32>
    %135 = arith.mulf %132, %134 : vector<2x32xf32>
    %136 = tpu.concatenate %92, %135 in 1 : vector<2x32xf32>, vector<2x32xf32> -> vector<2x64xf32>
    %c1_48 = arith.constant 1 : index
    %c128_49 = arith.constant 128 : index
    %c0_50 = arith.constant 0 : index
    %137 = vector.load %arg4[%c1_48, %c128_49, %c0_50] : memref<2x192x32xf32, #tpu.memory_space<vmem>>, vector<1x64x32xf32>
    %138 = vector.shape_cast %137 : vector<1x64x32xf32> to vector<64x32xf32>
    %cst_51 = arith.constant dense<0.000000e+00> : vector<2x32xf32>
    %139 = tpu.matmul %136, %138, %cst_51 {dimension_numbers = #tpu.dot_dimension_numbers<[1], [0], [0], [1], [0, 0, 1, 1], [], []>} : vector<2x64xf32>, vector<64x32xf32>, vector<2x32xf32> -> vector<2x32xf32>
    %140 = vector.extract_strided_slice %94 {offsets = [6, 0], sizes = [1, 32], strides = [1, 1]} : vector<8x32xf32> to vector<1x32xf32>
    %141 = vector.broadcast %140 : vector<1x32xf32> to vector<2x32xf32>
    %142 = arith.addf %139, %141 : vector<2x32xf32>
    %143 = vector.broadcast %5 : f32 to vector<2x32xf32>
    %144 = arith.mulf %143, %142 : vector<2x32xf32>
    %145 = arith.addf %92, %144 : vector<2x32xf32>
    %146 = tpu.concatenate %135, %145 in 1 : vector<2x32xf32>, vector<2x32xf32> -> vector<2x64xf32>
    %c1_52 = arith.constant 1 : index
    %c0_53 = arith.constant 0 : index
    %c0_54 = arith.constant 0 : index
    %147 = vector.load %arg9[%c1_52, %c0_53, %c0_54] : memref<2x2x64xf32, #tpu.memory_space<vmem>>, vector<1x2x64xf32>
    %148 = vector.shape_cast %147 : vector<1x2x64xf32> to vector<2x64xf32>
    %149 = vector.shape_cast %146 : vector<2x64xf32> to vector<1x2x64xf32>
    tpu.vector_store %arg9[%c1_52, %c0_53, %c0_54], %149 {strides = array<i32>} : memref<2x2x64xf32, #tpu.memory_space<vmem>>, vector<1x2x64xf32>,
    %150 = arith.addf %89, %124 : vector<2x32xf32>
    %151 = vector.extract_strided_slice %94 {offsets = [5, 0], sizes = [1, 32], strides = [1, 1]} : vector<8x32xf32> to vector<1x32xf32>
    %152 = vector.broadcast %151 : vector<1x32xf32> to vector<2x32xf32>
    %153 = arith.addf %150, %152 : vector<2x32xf32>
    %c0_55 = arith.constant 0 : index
    %c7 = arith.constant 7 : index
    %c0_56 = arith.constant 0 : index
    %154 = vector.load %arg6[%c0_55, %c7, %c0_56] : memref<2x8x32xf32, #tpu.memory_space<vmem>>, vector<1x1x32xf32>
    %155 = vector.shape_cast %154 : vector<1x1x32xf32> to vector<1x32xf32>
    %156 = vector.broadcast %155 : vector<1x32xf32> to vector<2x32xf32>
    %157 = arith.addf %156, %153 : vector<2x32xf32>
    %158 = arith.addf %157, %22 : vector<2x32xf32>
    %159 = math.cos %158 : vector<2x32xf32>
    %160 = math.sin %158 : vector<2x32xf32>
    %161 = arith.mulf %23, %159 : vector<2x32xf32>
    %162 = arith.mulf %24, %160 : vector<2x32xf32>
    %163 = arith.subf %161, %162 : vector<2x32xf32>
    %164 = arith.mulf %23, %160 : vector<2x32xf32>
    %165 = arith.mulf %24, %159 : vector<2x32xf32>
    %166 = arith.addf %164, %165 : vector<2x32xf32>
    %cst_57 = arith.constant 0.000000e+00 : f32
    %167 = vector.broadcast %cst_57 : f32 to vector<2x64xf32>
    %168 = tpu.concatenate %163, %166, %82, %146, %167 in 1 : vector<2x32xf32>, vector<2x32xf32>, vector<2x64xf32>, vector<2x64xf32>, vector<2x64xf32> -> vector<2x256xf32>
    %c0_58 = arith.constant 0 : index
    %c0_59 = arith.constant 0 : index
    %c0_60 = arith.constant 0 : index
    %169 = vector.load %arg8[%c0_58, %c0_59, %c0_60] : memref<1x2x256xf32, #tpu.memory_space<vmem>>, vector<1x2x256xf32>
    %170 = vector.shape_cast %169 : vector<1x2x256xf32> to vector<2x256xf32>
    %171 = vector.shape_cast %168 : vector<2x256xf32> to vector<1x2x256xf32>
    tpu.vector_store %arg8[%c0_58, %c0_59, %c0_60], %171 {strides = array<i32>} : memref<1x2x256xf32, #tpu.memory_space<vmem>>, vector<1x2x256xf32>,
    return
  }
  func.func @transform_0(%arg0: i32, %arg1: memref<8x2xi32, #tpu.memory_space<smem>>, %arg2: memref<8xf32, #tpu.memory_space<smem>>) -> (i32, i32) {
    %c0_i32 = arith.constant 0 : i32
    %c0_i32_0 = arith.constant 0 : i32
    %c0_i32_1 = arith.constant 0 : i32
    return %c0_i32, %c0_i32_0 : i32, i32
  }
  func.func @transform_1(%arg0: i32, %arg1: memref<8x2xi32, #tpu.memory_space<smem>>, %arg2: memref<8xf32, #tpu.memory_space<smem>>) -> (i32, i32, i32) {
    %c0_i32 = arith.constant 0 : i32
    %c0_i32_0 = arith.constant 0 : i32
    %c0_i32_1 = arith.constant 0 : i32
    %c0_i32_2 = arith.constant 0 : i32
    return %c0_i32, %c0_i32_0, %c0_i32_1 : i32, i32, i32
  }
  func.func @transform_2(%arg0: i32, %arg1: memref<8x2xi32, #tpu.memory_space<smem>>, %arg2: memref<8xf32, #tpu.memory_space<smem>>) -> (i32, i32, i32) {
    %c0_i32 = arith.constant 0 : i32
    %c0_i32_0 = arith.constant 0 : i32
    %c0_i32_1 = arith.constant 0 : i32
    %c0_i32_2 = arith.constant 0 : i32
    return %c0_i32, %c0_i32_0, %c0_i32_1 : i32, i32, i32
  }
  func.func @transform_3(%arg0: i32, %arg1: memref<8x2xi32, #tpu.memory_space<smem>>, %arg2: memref<8xf32, #tpu.memory_space<smem>>) -> (i32, i32, i32) {
    %c0_i32 = arith.constant 0 : i32
    %c0_i32_0 = arith.constant 0 : i32
    %c0_i32_1 = arith.constant 0 : i32
    %c0_i32_2 = arith.constant 0 : i32
    return %c0_i32, %c0_i32_0, %c0_i32_1 : i32, i32, i32
  }
  func.func @transform_4(%arg0: i32, %arg1: memref<8x2xi32, #tpu.memory_space<smem>>, %arg2: memref<8xf32, #tpu.memory_space<smem>>) -> (i32, i32, i32) {
    %c0_i32 = arith.constant 0 : i32
    %c0_i32_0 = arith.constant 0 : i32
    %c0_i32_1 = arith.constant 0 : i32
    %c0_i32_2 = arith.constant 0 : i32
    return %c0_i32, %c0_i32_0, %c0_i32_1 : i32, i32, i32
  }
  func.func @transform_5(%arg0: i32, %arg1: memref<8x2xi32, #tpu.memory_space<smem>>, %arg2: memref<8xf32, #tpu.memory_space<smem>>) -> (i32, i32, i32) {
    %c0_i32 = arith.constant 0 : i32
    %c0_i32_0 = arith.constant 0 : i32
    %c0_i32_1 = arith.constant 0 : i32
    return %arg0, %c0_i32, %c0_i32_0 : i32, i32, i32
  }
}

</mosaic_0001>

<llo_original>
// kernel: custom-call
$region0: #{custom-call}
  %s0 = inlined_call_operand.vmem [shape: f32[8,2,32], index: 0, kind: input, shape index: {}]
  %s1 = inlined_call_operand.vmem [shape: f32[8,2,32], index: 1, kind: input, shape index: {}]
  %s2 = inlined_call_operand.hbm [shape: c64[8,2,32], index: 2, kind: output, shape index: {}]
  %s3 = scalar_lea.hbm %s2, 16
  $region1: #{custom-call} parent=0
    #allocation0 [shape = 's32[1]{0}', space=sflag, size = 0x4, scoped, tag = 'scoped memory for custom-call']
    %4 = vsyncpa [#allocation0], 0
    %s6 = sshll.u32 %s0, 4
    %s7 = int_to_ptr.vmem [resolvable:$true] %s6
    %s8 = sshll.u32 %s2, 4
    %s9 = int_to_ptr.hbm [resolvable:$true] %s8
    %11 = dma.vmem_to_hbm [thread:$0]  %s7, 256, %s9, [#allocation0]
    %13 = dma.done [#allocation0], 256
    %14 = vsyncpa [#allocation0], 1
  $region2: #{custom-call} parent=0
    #allocation1 [shape = 's32[1]{0}', space=sflag, size = 0x4, scoped, tag = 'scoped memory for custom-call']
    %15 = vsyncpa [#allocation1], 0
    %s17 = sshll.u32 %s1, 4
    %s18 = int_to_ptr.vmem [resolvable:$true] %s17
    %s19 = sshll.u32 %s3, 4
    %s20 = int_to_ptr.hbm [resolvable:$true] %s19
    %22 = dma.vmem_to_hbm [thread:$0]  %s18, 256, %s20, [#allocation1]
    %24 = dma.done [#allocation1], 256
    %25 = vsyncpa [#allocation1], 1

// kernel: rotator_forward_seq.1
$region0: #{rotator_forward_seq.1}
  #allocation0 [shape = 'u32[]', space=smem, size = 0x4, offset = 0x4, fixed_abs, tag = 'smem constant byte address 0x4 - core index']
  #allocation1 [shape = 'u32[72,128]{1,0:T(1,128)}', space=vmem, size = 0x9000, scoped, tag = 'internal scratch']
  #allocation2 [shape = 'f32[2,2,64]{2,1,0:T(2,128)}', space=vmem, size = 0x800, scoped, tag = 'scratch operand']
  #allocation3 [shape = 's32[1]{0}', space=sflag, size = 0x4, scoped, tag = 'scoped memory for rotator_forward_seq.1']
  #allocation4 [shape = 'u8[4096]{0}', space=smem, size = 0x1000, scoped, tag = 'prefetched SMEM operand 0']
  #allocation5 [shape = 'u8[512]{0}', space=smem, size = 0x200, scoped, tag = 'prefetched SMEM operand 1']
  %s0 = inlined_call_operand.vmem [shape: s32[8,2], index: 0, kind: input, shape index: {}]
  %s1 = inlined_call_operand.vmem [shape: f32[8], index: 1, kind: input, shape index: {}]
  %s2 = inlined_call_operand.vmem [shape: f32[32,96], index: 2, kind: input, shape index: {}]
  %s3 = inlined_call_operand.vmem [shape: f32[2,192,32], index: 3, kind: input, shape index: {}]
  %s4 = inlined_call_operand.vmem [shape: f32[2,64,96], index: 4, kind: input, shape index: {}]
  %s5 = inlined_call_operand.vmem [shape: f32[2,8,32], index: 5, kind: input, shape index: {}]
  %s6 = inlined_call_operand.vmem [shape: f32[2,2,64], index: 6, kind: input, shape index: {}]
  %s7 = inlined_call_operand.vmem [shape: f32[8,2,256], index: 7, kind: output, shape index: {}]
  %s8 = sld [smem:[#allocation0]]
  $region57: #{rotator_forward_seq.1} parent=0
    _
  %s10 = ssub.s32 1, %s8
  %s11 = scalar_select 0, %s10, %s8
  %s13 = sshll.u32 %s0, 4
  %s14 = int_to_ptr.vmem [resolvable:$true] %s13
  %16 = dma.vmem_to_smem %s14, 128, [#allocation4], [#allocation3]
  %s18 = sshll.u32 %s1, 4
  %s19 = int_to_ptr.vmem [resolvable:$true] %s18
  %21 = dma.vmem_to_smem %s19, 16, [#allocation5], [#allocation3]
  %23 = dma.done [#allocation3], 144
  %24 = sfence
  loop: start=0, step=1, limit=10
  $region2: #{rotator_forward_seq.1} parent=0 // loop_pre_header
    _
  $region3: #{rotator_forward_seq.1} parent=0 // loop_header
    %s26 = sphi 0, %s30
    %p27 = scmp.ge.s32.totalorder %s26, 10
    %s34 = sphi 0, %s34
    %s36 = sphi 0, %s34
    %s37 = sphi 0, %s36
    %s51 = sphi 0, %s37
    %s55 = sphi 0, %s55
    %s57 = sphi 0, %s55
    %s58 = sphi 0, %s57
    %s72 = sphi 0, %s58
    %s76 = sphi 0, %s76
    %s78 = sphi 0, %s76
    %s79 = sphi 0, %s78
    %s93 = sphi 0, %s79
    %s97 = sphi 0, %s97
    %s99 = sphi 0, %s97
    %s100 = sphi 0, %s99
    %s114 = sphi 0, %s100
    %s118 = sphi 0, %s118
    %s120 = sphi 0, %s118
    %s121 = sphi 0, %s120
    %s135 = sphi 0, %s121
    %s141 = sphi 0, %s143
    %s144 = sphi 0, %s141
    %s145 = sphi 0, %s144
    %s161 = sphi 0, %s145
  $region4: #{rotator_forward_seq.1} parent=0 // loop_header_branch
    %29 = sbr.rel (%p27) target = $region8
  $region5: #{rotator_forward_seq.1} parent=0 // loop_body
    %s31 = ssub.s32 %s26, 1
    %s32 = ssub.s32 %s26, 2
    %s33 = sadd.s32 %s26, 1
    %s35 = sadd.s32 %s34, 1
    %p38 = scmp.eq.s32.totalorder %s26, 7
    %p39 = scmp.ne.s32.totalorder %s34, %s36
    %p40 = scmp.eq.s32.totalorder %s26, 0
    %p41 = por %p39, %p40
    %p42 = scmp.ne.s32.totalorder %s34, %s36
    %p43 = scmp.eq.s32.totalorder %s31, 7
    %p44 = por %p42, %p43
    %p45 = scmp.ne.s32.totalorder %s36, %s37
    %p46 = scmp.eq.s32.totalorder %s31, 0
    %p47 = por %p45, %p46
    %p48 = scmp.ne.s32.totalorder %s36, %s37
    %p49 = scmp.eq.s32.totalorder %s32, 7
    %p50 = por %p48, %p49
    %p52 = scmp.ne.s32.totalorder %s37, %s51
    %p53 = scmp.eq.s32.totalorder %s32, 0
    %p54 = por %p52, %p53
    %s56 = sadd.s32 %s55, 1
    %p59 = scmp.eq.s32.totalorder %s26, 7
    %p60 = scmp.ne.s32.totalorder %s55, %s57
    %p61 = scmp.eq.s32.totalorder %s26, 0
    %p62 = por %p60, %p61
    %p63 = scmp.ne.s32.totalorder %s55, %s57
    %p64 = scmp.eq.s32.totalorder %s31, 7
    %p65 = por %p63, %p64
    %p66 = scmp.ne.s32.totalorder %s57, %s58
    %p67 = scmp.eq.s32.totalorder %s31, 0
    %p68 = por %p66, %p67
    %p69 = scmp.ne.s32.totalorder %s57, %s58
    %p70 = scmp.eq.s32.totalorder %s32, 7
    %p71 = por %p69, %p70
    %p73 = scmp.ne.s32.totalorder %s58, %s72
    %p74 = scmp.eq.s32.totalorder %s32, 0
    %p75 = por %p73, %p74
    %s77 = sadd.s32 %s76, 1
    %p80 = scmp.eq.s32.totalorder %s26, 7
    %p81 = scmp.ne.s32.totalorder %s76, %s78
    %p82 = scmp.eq.s32.totalorder %s26, 0
    %p83 = por %p81, %p82
    %p84 = scmp.ne.s32.totalorder %s76, %s78
    %p85 = scmp.eq.s32.totalorder %s31, 7
    %p86 = por %p84, %p85
    %p87 = scmp.ne.s32.totalorder %s78, %s79
    %p88 = scmp.eq.s32.totalorder %s31, 0
    %p89 = por %p87, %p88
    %p90 = scmp.ne.s32.totalorder %s78, %s79
    %p91 = scmp.eq.s32.totalorder %s32, 7
    %p92 = por %p90, %p91
    %p94 = scmp.ne.s32.totalorder %s79, %s93
    %p95 = scmp.eq.s32.totalorder %s32, 0
    %p96 = por %p94, %p95
    %s98 = sadd.s32 %s97, 1
    %p101 = scmp.eq.s32.totalorder %s26, 7
    %p102 = scmp.ne.s32.totalorder %s97, %s99
    %p103 = scmp.eq.s32.totalorder %s26, 0
    %p104 = por %p102, %p103
    %p105 = scmp.ne.s32.totalorder %s97, %s99
    %p106 = scmp.eq.s32.totalorder %s31, 7
    %p107 = por %p105, %p106
    %p108 = scmp.ne.s32.totalorder %s99, %s100
    %p109 = scmp.eq.s32.totalorder %s31, 0
    %p110 = por %p108, %p109
    %p111 = scmp.ne.s32.totalorder %s99, %s100
    %p112 = scmp.eq.s32.totalorder %s32, 7
    %p113 = por %p111, %p112
    %p115 = scmp.ne.s32.totalorder %s100, %s114
    %p116 = scmp.eq.s32.totalorder %s32, 0
    %p117 = por %p115, %p116
    %s119 = sadd.s32 %s118, 1
    %p122 = scmp.eq.s32.totalorder %s26, 7
    %p123 = scmp.ne.s32.totalorder %s118, %s120
    %p124 = scmp.eq.s32.totalorder %s26, 0
    %p125 = por %p123, %p124
    %p126 = scmp.ne.s32.totalorder %s118, %s120
    %p127 = scmp.eq.s32.totalorder %s31, 7
    %p128 = por %p126, %p127
    %p129 = scmp.ne.s32.totalorder %s120, %s121
    %p130 = scmp.eq.s32.totalorder %s31, 0
    %p131 = por %p129, %p130
    %p132 = scmp.ne.s32.totalorder %s120, %s121
    %p133 = scmp.eq.s32.totalorder %s32, 7
    %p134 = por %p132, %p133
    %p136 = scmp.ne.s32.totalorder %s121, %s135
    %p137 = scmp.eq.s32.totalorder %s32, 0
    %p138 = por %p136, %p137
    %s139 = ssub.s32 %s26, %s33
    %p140 = scmp.eq.s32.totalorder %s139, 0
    %s142 = sadd.s32 %s141, 1
    %s143 = scalar_select %p140, %s141, %s142
    %p146 = pneg %p140
    %p147 = scmp.eq.s32.totalorder %s26, 7
    %p148 = por %p146, %p147
    %p149 = scmp.ne.s32.totalorder %s141, %s144
    %p150 = scmp.eq.s32.totalorder %s26, 0
    %p151 = por %p149, %p150
    %p152 = scmp.ne.s32.totalorder %s141, %s144
    %p153 = scmp.eq.s32.totalorder %s31, 7
    %p154 = por %p152, %p153
    %p155 = scmp.ne.s32.totalorder %s144, %s145
    %p156 = scmp.eq.s32.totalorder %s31, 0
    %p157 = por %p155, %p156
    %p158 = scmp.ne.s32.totalorder %s144, %s145
    %p159 = scmp.eq.s32.totalorder %s32, 7
    %p160 = por %p158, %p159
    %p162 = scmp.ne.s32.totalorder %s145, %s161
    %p163 = scmp.eq.s32.totalorder %s32, 0
    %p164 = por %p162, %p163
    %p165 = scmp.le.s32.totalorder 1, %s26
    %p166 = scmp.lt.s32.totalorder %s26, 9
    %p167 = pnand %p165, %p166
    %p168 = pneg %p167
    // Predicated region
    $region9: #{rotator_forward_seq.1} parent=5 // pred_check
      _
    $region10: #{rotator_forward_seq.1} parent=5 // pred_check_branch
      %170 = sbr.rel (%p167) target = $region12
    $region11: #{rotator_forward_seq.1} parent=5 // pred_region
      %s171 = ssub.s32 %s26, 1
      // Predicated region
      $region13: #{rotator_forward_seq.1} parent=11 // pred_check
        %p172 = pneg %p47
      $region14: #{rotator_forward_seq.1} parent=11 // pred_check_branch
        %174 = sbr.rel (%p172) target = $region16
      $region15: #{rotator_forward_seq.1} parent=11 // pred_region
        _
      $region16: #{rotator_forward_seq.1} parent=11 // pred_fallthru
        _
      // Predicated region
      $region17: #{rotator_forward_seq.1} parent=11 // pred_check
        %p175 = pneg %p68
      $region18: #{rotator_forward_seq.1} parent=11 // pred_check_branch
        %177 = sbr.rel (%p175) target = $region20
      $region19: #{rotator_forward_seq.1} parent=11 // pred_region
        _
      $region20: #{rotator_forward_seq.1} parent=11 // pred_fallthru
        _
      // Predicated region
      $region21: #{rotator_forward_seq.1} parent=11 // pred_check
        %p178 = pneg %p89
      $region22: #{rotator_forward_seq.1} parent=11 // pred_check_branch
        %180 = sbr.rel (%p178) target = $region24
      $region23: #{rotator_forward_seq.1} parent=11 // pred_region
        _
      $region24: #{rotator_forward_seq.1} parent=11 // pred_fallthru
        _
      // Predicated region
      $region25: #{rotator_forward_seq.1} parent=11 // pred_check
        %p181 = pneg %p110
      $region26: #{rotator_forward_seq.1} parent=11 // pred_check_branch
        %183 = sbr.rel (%p181) target = $region28
      $region27: #{rotator_forward_seq.1} parent=11 // pred_region
        _
      $region28: #{rotator_forward_seq.1} parent=11 // pred_fallthru
        _
      // Predicated region
      $region29: #{rotator_forward_seq.1} parent=11 // pred_check
        %p184 = pneg %p131
      $region30: #{rotator_forward_seq.1} parent=11 // pred_check_branch
        %186 = sbr.rel (%p184) target = $region32
      $region31: #{rotator_forward_seq.1} parent=11 // pred_region
        _
      $region32: #{rotator_forward_seq.1} parent=11 // pred_fallthru
        _
    $region12: #{rotator_forward_seq.1} parent=5 // pred_fallthru
      _
    %p187 = scmp.lt.s32.totalorder %s26, 8
    // Predicated region
    $region33: #{rotator_forward_seq.1} parent=5 // pred_check
      %p188 = pneg %p187
    $region34: #{rotator_forward_seq.1} parent=5 // pred_check_branch
      %190 = sbr.rel (%p188) target = $region36
    $region35: #{rotator_forward_seq.1} parent=5 // pred_region
      _
    $region36: #{rotator_forward_seq.1} parent=5 // pred_fallthru
      _
    %p191 = scmp.le.s32.totalorder 1, %s26
    %p192 = scmp.lt.s32.totalorder %s26, 9
    %p193 = pnand %p191, %p192
    %p194 = pneg %p193
    // Predicated region
    $region37: #{rotator_forward_seq.1} parent=5 // pred_check
      _
    $region38: #{rotator_forward_seq.1} parent=5 // pred_check_branch
      %196 = sbr.rel (%p193) target = $region40
    $region39: #{rotator_forward_seq.1} parent=5 // pred_region
      %s197 = ssub.s32 %s26, 1
      %p198 = pneg %p47
      %p199 = pneg %p44
      %p200 = pneg %p68
      %p201 = pneg %p65
      %p202 = pneg %p89
      %p203 = pneg %p86
      %p204 = pneg %p110
      %p205 = pneg %p107
      %p206 = pneg %p131
      %p207 = pneg %p128
      %p208 = pneg %p157
      %p209 = pneg %p154
      %p210 = scmp.lt.s32.totalorder %s31, 7
      %s211 = scalar_select %p210, %s31, 7
      %s212 = smul.addr %s211, 2
      %s213 = smul.addr %s212, 2
      %s214 = scalar_lea.vmem %s7, %s213
      %p215 = scmp.lt.s32.totalorder %s31, 7
      %s216 = scalar_select %p215, %s31, 7
      %s217 = smul.addr %s216, 2
      %s218 = smul.addr %s217, 2
      %s219 = scalar_lea.vmem %s7, %s218
      %p220 = scmp.eq.s32.totalorder %s31, 0
      // Predicated region
      $region41: #{rotator_forward_seq.1} parent=39 // pred_check
        %p221 = pneg %p220
      $region42: #{rotator_forward_seq.1} parent=39 // pred_check_branch
        %223 = sbr.rel (%p221) target = $region44
      $region43: #{rotator_forward_seq.1} parent=39 // pred_region
        %v224 = vld [vmem:[%s6] sm:$0x3]
        %v225 = vld [vmem:[%s6 + $0x2] sm:$0x3]
        %vm226 = vcmask 517120
        %227 = vst.msk [vmem:[#allocation2] sm:$0x3] %vm226, %v224
        %228 = vst.msk [vmem:[#allocation2 + $0x2] sm:$0x3] %vm226, %v225
      $region44: #{rotator_forward_seq.1} parent=39 // pred_fallthru
        _
      %s229 = sld [smem:[#allocation5 + %s31]]
      %v230 = vstv %s229
      %v231 = vrcp.pop %v230
      %v232 = vmul.f32 %v230, %v231
      %v233 = vsub.f32 1.0, %v232
      %v234 = vmul.f32 %v231, %v233
      %v235 = vadd.f32 %v231, %v234
      %vm236 = vweird.f32 %v230
      %vm237 = vweird.f32 %v231
      %vm238 = vmor %vm236, %vm237
      %v239 = vsel %vm238, %v231, %v235
      %v240 = vand.u32 2147483647, %v230
      %vm241 = vcmp.eq.f32.partialorder %v240, 8.507059e+37
      %v242 = vand.u32 %v230, 2147483648
      %v243 = vor.u32 1.1754944e-38, %v242
      %v244 = vsel %vm241, %v243, %v239
      %s245 = vtos %v244
      %v246 = vlaneseq
      %v247 = vand.u32 %v246, 127
      %s248 = smul.u32 %s31, 128
      %s249 = sld [smem:[#allocation4 + %s248]]
      %v250 = vstv %s249
      %vm251 = vcmp.eq.s32.totalorder %v247, %v250
      %v252 = vsel %vm251, 1, 0
      %v253 = vcvt.s32.f32 %v252
      %s254 = sadd.s32 %s248, 1
      %s255 = sld [smem:[#allocation4 + %s254]]
      %v256 = vstv %s255
      %vm257 = vcmp.eq.s32.totalorder %v247, %v256
      %v258 = vsel %vm257, 1, 0
      %v259 = vcvt.s32.f32 %v258
      %vm260 = vcmask 1040384
      %v261 = vsel %vm260, %v253, %v259
      %v262 = vld [vmem:[%s2] sm:$0xff]
      %v263 = vld [vmem:[%s2 + $0x8] sm:$0xff]
      %v264 = vld [vmem:[%s2 + $0x10] sm:$0xff]
      %v265 = vld [vmem:[%s2 + $0x18] sm:$0xff]
      %vm266 = vcmask 261120
      %v268 = vsel %vm266, %v261, 0
      %270 = vmatpush.msra.mxu0 0.0
      %271 = vmatpush.msra.mxu0 0.0
      %272 = vmatpush.msra.mxu0 0.0
      %273 = vmatpush.msra.mxu0 0.0
      %274 = vmatpush.msra.mxu0 0.0
      %275 = vmatpush.msra.mxu0 0.0
      %276 = vmatpush.msra.mxu0 0.0
      %277 = vmatpush.msra.mxu0 0.0
      %278 = vmatpush.msra.mxu0 0.0
      %279 = vmatpush.msra.mxu0 0.0
      %280 = vmatpush.msra.mxu0 0.0
      %281 = vmatpush.msra.mxu0 0.0
      %282 = vmatpush.msra.mxu0 %v265
      %283 = vmatpush.msra.mxu0 %v264
      %284 = vmatpush.msra.mxu0 %v263
      %285 = vmatpush.msra.mxu0 %v262
      %286 = vmatmul.f32.gmra.mxu0 %v268
      %v287 = vpop.f32.mrf.mxu0
      %v288 = vadd.f32 0.0, %v287
      %289 = vdwg.mxu0
      %v290 = vld [vmem:[#allocation2] sm:$0x3]
      %v291 = vld [vmem:[%s5] sm:$0xff]
      %293 = vrot.lane.b32.xlu0 %v290, 32
      %v294 = vpop.permute.xlu0 %293
      %v296 = vsel %vm266, %v288, %v294
      %v297 = vld [vmem:[%s3] sm:$0xff]
      %v298 = vld [vmem:[%s3 + $0x8] sm:$0xff]
      %v299 = vld [vmem:[%s3 + $0x10] sm:$0xff]
      %v300 = vld [vmem:[%s3 + $0x18] sm:$0xff]
      %v301 = vld [vmem:[%s3 + $0x20] sm:$0xff]
      %v302 = vld [vmem:[%s3 + $0x28] sm:$0xff]
      %v303 = vld [vmem:[%s3 + $0x30] sm:$0xff]
      %v304 = vld [vmem:[%s3 + $0x38] sm:$0xff]
      %v305 = vld [vmem:[%s3 + $0x40] sm:$0xff]
      %v306 = vld [vmem:[%s3 + $0x48] sm:$0xff]
      %v307 = vld [vmem:[%s3 + $0x50] sm:$0xff]
      %v308 = vld [vmem:[%s3 + $0x58] sm:$0xff]
      %v309 = vperm.slane %v291, 0
      %vm310 = vcmask 785408
      %v312 = vsel %vm310, %v296, 0
      %314 = vmatpush.msra.mxu0 0.0
      %315 = vmatpush.msra.mxu0 0.0
      %316 = vmatpush.msra.mxu0 0.0
      %317 = vmatpush.msra.mxu0 0.0
      %318 = vmatpush.msra.mxu0 %v308
      %319 = vmatpush.msra.mxu0 %v307
      %320 = vmatpush.msra.mxu0 %v306
      %321 = vmatpush.msra.mxu0 %v305
      %322 = vmatpush.msra.mxu0 %v304
      %323 = vmatpush.msra.mxu0 %v303
      %324 = vmatpush.msra.mxu0 %v302
      %325 = vmatpush.msra.mxu0 %v301
      %326 = vmatpush.msra.mxu0 %v300
      %327 = vmatpush.msra.mxu0 %v299
      %328 = vmatpush.msra.mxu0 %v298
      %329 = vmatpush.msra.mxu0 %v297
      %330 = vmatmul.f32.gmra.mxu0 %v312
      %v331 = vpop.f32.mrf.mxu0
      %v332 = vadd.f32 %v309, %v331
      %333 = vdwg.mxu0
      %v334 = vand.u32 2147483647, %v332
      %vm335 = vcmp.le.f32.partialorder %v334, 0.7853982
      %vm336 = vcmp.lt.s32.totalorder %v332, 0
      %v337 = vand.u32 %v332, 2139095040
      %v338 = vshrl.u32 %v337, 23
      %v339 = vsub.s32 %v338, 127
      %v340 = vand.u32 2147483647, %v332
      %v341 = vand.u32 %v340, 8388607
      %v342 = vor.u32 %v341, 8388608
      %v343 = vsub.s32 0, %v342
      %v344 = vadd.s32 %v339, 1
      %vm345 = vcmp.gt.s32.totalorder %v344, 0
      %v346 = vsel %vm345, %v344, 0
      %v347 = vshrl.u32 %v346, 5
      %v348 = vand.u32 %v346, 31
      %v349 = vsub.s32 32, %v348
      %v350 = vshrl.u32 683565275, %v349
      %v351 = vshll.u32 683565275, %v348
      %v352 = vshrl.u32 2475754826, %v349
      %v353 = vor.u32 %v351, %v352
      %v354 = vshll.u32 2475754826, %v348
      %v355 = vshrl.u32 2131351028, %v349
      %v356 = vor.u32 %v354, %v355
      %v357 = vshll.u32 2131351028, %v348
      %v358 = vshrl.u32 2102212464, %v349
      %v359 = vor.u32 %v357, %v358
      %v360 = vshll.u32 2102212464, %v348
      %v361 = vshrl.u32 920167782, %v349
      %v362 = vor.u32 %v360, %v361
      %v363 = vshll.u32 920167782, %v348
      %v364 = vshrl.u32 1326507024, %v349
      %v365 = vor.u32 %v363, %v364
      %vm366 = vcmp.lt.s32.totalorder %v347, 1
      %vm367 = vcmp.lt.s32.totalorder %v347, 2
      %vm368 = vcmp.lt.s32.totalorder %v347, 3
      %vm369 = vcmp.lt.s32.totalorder %v347, 4
      %v370 = vsel %vm366, %v350, %v353
      %v371 = vsel %vm369, %v359, 2102212464
      %v372 = vsel %vm368, %v356, %v371
      %v373 = vsel %vm367, %v370, %v372
      %v374 = vsel %vm366, %v353, %v356
      %v375 = vsel %vm369, %v362, 920167782
      %v376 = vsel %vm368, %v359, %v375
      %v377 = vsel %vm367, %v374, %v376
      %v378 = vsel %vm366, %v356, %v359
      %v379 = vsel %vm369, %v365, 1326507024
      %v380 = vsel %vm368, %v362, %v379
      %v381 = vsel %vm367, %v378, %v380
      %v382 = vshll.u32 %v342, 8
      %v383 = vand.u32 %v382, 65535
      %v384 = vshrl.u32 %v382, 16
      %v385 = vand.u32 %v381, 65535
      %v386 = vshrl.u32 %v381, 16
      %v387 = vmul.u32 %v383, %v385
      %v388 = vmul.u32 %v383, %v386
      %v389 = vmul.u32 %v384, %v385
      %v390 = vmul.u32 %v384, %v386
      %v391 = vshll.u32 %v388, 16
      %v392 = vshrl.u32 %v388, 16
      %v393 = vshll.u32 %v389, 16
      %v394 = vshrl.u32 %v389, 16
      %vm395 = vc.u32 %v387, %v391
      %v396 = vsel %vm395, 1, 0
      %v397 = vadd.s32 %v387, %v391
      %v398 = vadd.s32 %v390, %v396
      %vm399 = vc.u32 %v397, %v393
      %v400 = vsel %vm399, 1, 0
      %v401 = vadd.s32 %v397, %v393
      %v402 = vadd.s32 %v398, %v400
      %v403 = vadd.s32 %v402, %v392
      %v404 = vadd.s32 %v403, %v394
      %v405 = vand.u32 %v382, 65535
      %v406 = vshrl.u32 %v382, 16
      %v407 = vand.u32 %v377, 65535
      %v408 = vshrl.u32 %v377, 16
      %v409 = vmul.u32 %v405, %v407
      %v410 = vmul.u32 %v405, %v408
      %v411 = vmul.u32 %v406, %v407
      %v412 = vmul.u32 %v406, %v408
      %v413 = vshll.u32 %v410, 16
      %v414 = vshrl.u32 %v410, 16
      %v415 = vshll.u32 %v411, 16
      %v416 = vshrl.u32 %v411, 16
      %vm417 = vc.u32 %v409, %v413
      %v418 = vsel %vm417, 1, 0
      %v419 = vadd.s32 %v409, %v413
      %v420 = vadd.s32 %v412, %v418
      %vm421 = vc.u32 %v419, %v415
      %v422 = vsel %vm421, 1, 0
      %v423 = vadd.s32 %v419, %v415
      %v424 = vadd.s32 %v420, %v422
      %v425 = vadd.s32 %v424, %v414
      %v426 = vadd.s32 %v425, %v416
      %v427 = vmul.u32 %v382, %v373
      %v428 = vadd.s32 %v404, %v423
      %vm429 = vc.u32 %v404, %v423
      %v430 = vadd.s32 %v426, 1
      %v431 = vsel %vm429, %v430, %v426
      %v432 = vadd.s32 %v427, %v431
      %v433 = vadd.s32 %v432, 536870912
      %v434 = vshrl.u32 %v433, 30
      %v435 = vshll.u32 %v434, 30
      %v436 = vsub.s32 %v432, %v435
      %vm437 = vcmp.lt.s32.totalorder %v436, 0
      %v438 = vsub.s32 0, %v436
      %v439 = vsel %vm437, %v438, %v436
      %v440 = vclz %v439
      %v441 = vsub.s32 %v440, 2
      %vm442 = vcmp.gt.s32.totalorder 0, %v441
      %v443 = vsel %vm442, 0, %v441
      %v444 = vsub.s32 32, %v443
      %v445 = vshll.u32 %v436, %v443
      %v446 = vshrl.u32 %v428, %v444
      %v447 = vor.u32 %v445, %v446
      %v448 = vsub.s32 4294967266, %v443
      %v449 = vadd.s32 %v448, 127
      %v450 = vshll.u32 %v449, 23
      %v451 = vor.u32 4788187, %v450
      %v452 = vand.u32 2147483647, %v451
      %v454 = vcvt.s32.f32 %v447
      %v455 = vmul.f32 %v454, %v452
      %v456 = vxor.u32 %v455, 2147483648
      %v457 = vsel %vm336, %v456, %v455
      %v458 = vsub.s32 4, %v434
      %v459 = vsel %vm336, %v458, %v434
      %v460 = vsel %vm335, %v332, %v457
      %v461 = vsel %vm335, 0, %v459
      %v462 = vmul.f32 %v460, %v460
      %v463 = vmul.f32 %v462, -0.001358992
      %v464 = vadd.f32 %v463, 0.041655596
      %v465 = vmul.f32 %v462, %v464
      %v466 = vadd.f32 %v465, -0.4999988
      %v467 = vmul.f32 %v462, %v466
      %v468 = vadd.f32 1.0, %v467
      %v469 = vmul.f32 %v460, %v460
      %v470 = vmul.f32 %v469, -0.00019511016
      %v471 = vadd.f32 %v470, 0.008332121
      %v472 = vmul.f32 %v469, %v471
      %v473 = vadd.f32 %v472, -0.16666654
      %v474 = vmul.f32 %v469, %v473
      %v475 = vadd.f32 %v474, 1.0
      %v476 = vmul.f32 %v475, %v460
      %vm477 = vweird.f32 %v332
      %v478 = vand.u32 %v461, 3
      %vm479 = vcmp.lt.s32.totalorder %v478, 2
      %vm480 = vcmp.eq.s32.totalorder %v478, 0
      %v481 = vxor.u32 %v476, 2147483648
      %v482 = vsel %vm480, %v468, %v481
      %vm483 = vcmp.eq.s32.totalorder %v478, 2
      %v484 = vxor.u32 %v468, 2147483648
      %v485 = vsel %vm483, %v484, %v476
      %v486 = vsel %vm479, %v482, %v485
      %v487 = vsel %vm477, nan, %v486
      %v488 = vperm.slane %v291, 2
      %v489 = vmul.f32 %v488, %v487
      %v490 = vperm.slane %v291, 1
      %v491 = vadd.f32 %v490, %v489
      %v492 = vmul.f32 %v487, %v487
      %v493 = vperm.slane %v291, 3
      %v494 = vmul.f32 %v493, %v492
      %v495 = vadd.f32 %v491, %v494
      %v496 = vld [vmem:[%s3 + $0x60] sm:$0xff]
      %v497 = vld [vmem:[%s3 + $0x68] sm:$0xff]
      %v498 = vld [vmem:[%s3 + $0x70] sm:$0xff]
      %v499 = vld [vmem:[%s3 + $0x78] sm:$0xff]
      %v501 = vsel %vm266, %v495, 0
      %503 = vmatpush.msra.mxu0 0.0
      %504 = vmatpush.msra.mxu0 0.0
      %505 = vmatpush.msra.mxu0 0.0
      %506 = vmatpush.msra.mxu0 0.0
      %507 = vmatpush.msra.mxu0 0.0
      %508 = vmatpush.msra.mxu0 0.0
      %509 = vmatpush.msra.mxu0 0.0
      %510 = vmatpush.msra.mxu0 0.0
      %511 = vmatpush.msra.mxu0 0.0
      %512 = vmatpush.msra.mxu0 0.0
      %513 = vmatpush.msra.mxu0 0.0
      %514 = vmatpush.msra.mxu0 0.0
      %515 = vmatpush.msra.mxu0 %v499
      %516 = vmatpush.msra.mxu0 %v498
      %517 = vmatpush.msra.mxu0 %v497
      %518 = vmatpush.msra.mxu0 %v496
      %519 = vmatmul.f32.gmra.mxu0 %v501
      %v520 = vpop.f32.mrf.mxu0
      %v521 = vadd.f32 0.0, %v520
      %522 = vdwg.mxu0
      %v523 = vmul.f32 %v521, %v521
      %525 = vrot.lane.b32.xlu0 %v523, 32
      %v526 = vpop.permute.xlu0 %525
      %v528 = vsel %vm266, %v521, %v526
      %v529 = vld [vmem:[%s4] sm:$0xff]
      %v530 = vld [vmem:[%s4 + $0x8] sm:$0xff]
      %v531 = vld [vmem:[%s4 + $0x10] sm:$0xff]
      %v532 = vld [vmem:[%s4 + $0x18] sm:$0xff]
      %v533 = vld [vmem:[%s4 + $0x20] sm:$0xff]
      %v534 = vld [vmem:[%s4 + $0x28] sm:$0xff]
      %v535 = vld [vmem:[%s4 + $0x30] sm:$0xff]
      %v536 = vld [vmem:[%s4 + $0x38] sm:$0xff]
      %vm537 = vcmask 523264
      %v539 = vsel %vm537, %v528, 0
      %541 = vmatpush.msra.mxu0 0.0
      %542 = vmatpush.msra.mxu0 0.0
      %543 = vmatpush.msra.mxu0 0.0
      %544 = vmatpush.msra.mxu0 0.0
      %545 = vmatpush.msra.mxu0 0.0
      %546 = vmatpush.msra.mxu0 0.0
      %547 = vmatpush.msra.mxu0 0.0
      %548 = vmatpush.msra.mxu0 0.0
      %549 = vmatpush.msra.mxu0 %v536
      %550 = vmatpush.msra.mxu0 %v535
      %551 = vmatpush.msra.mxu0 %v534
      %552 = vmatpush.msra.mxu0 %v533
      %553 = vmatpush.msra.mxu0 %v532
      %554 = vmatpush.msra.mxu0 %v531
      %555 = vmatpush.msra.mxu0 %v530
      %556 = vmatpush.msra.mxu0 %v529
      %557 = vmatmul.f32.gmra.mxu0 %v539
      %v558 = vpop.f32.mrf.mxu0
      %v559 = vadd.f32 0.0, %v558
      %560 = vdwg.mxu0
      %v561 = vmul.f32 %v559, %v559
      %563 = vrot.lane.b32.xlu0 %v561, 64
      %v564 = vpop.permute.xlu0 %563
      %v566 = vsub.f32 %v559, %v564
      %v567 = vsub.f32 %v521, %v559
      %v568 = vadd.f32 %v566, 1e-05
      %v569 = vrsqrt.pop %v568
      %v570 = vmul.f32 %v569, %v568
      %v571 = vmul.f32 %v570, %v569
      %v572 = vmul.f32 0.5, %v571
      %v573 = vsub.f32 1.5, %v572
      %v574 = vmul.f32 %v569, %v573
      %vm575 = vweird.f32 %v568
      %vm576 = vweird.f32 %v569
      %vm577 = vmor %vm575, %vm576
      %v578 = vsel %vm577, %v569, %v574
      %580 = vrot.lane.b32.xlu0 %v578, 64
      %v581 = vpop.permute.xlu0 %580
      %v583 = vmul.f32 %v567, %v581
      %v584 = vperm.slane %v291, 4
      %v585 = vmul.f32 %v583, %v584
      %586 = vrot.lane.b32.xlu0 %v290, 96
      %v587 = vpop.permute.xlu0 %586
      %590 = vrot.lane.b32.xlu0 %v585, 32
      %v591 = vpop.permute.xlu0 %590
      %v593 = vsel %vm266, %v587, %v591
      %v594 = vld [vmem:[%s3 + $0x80] sm:$0xff]
      %v595 = vld [vmem:[%s3 + $0x88] sm:$0xff]
      %v596 = vld [vmem:[%s3 + $0x90] sm:$0xff]
      %v597 = vld [vmem:[%s3 + $0x98] sm:$0xff]
      %v598 = vld [vmem:[%s3 + $0xa0] sm:$0xff]
      %v599 = vld [vmem:[%s3 + $0xa8] sm:$0xff]
      %v600 = vld [vmem:[%s3 + $0xb0] sm:$0xff]
      %v601 = vld [vmem:[%s3 + $0xb8] sm:$0xff]
      %v602 = vperm.slane %v291, 6
      %v604 = vsel %vm537, %v593, 0
      %606 = vmatpush.msra.mxu0 0.0
      %607 = vmatpush.msra.mxu0 0.0
      %608 = vmatpush.msra.mxu0 0.0
      %609 = vmatpush.msra.mxu0 0.0
      %610 = vmatpush.msra.mxu0 0.0
      %611 = vmatpush.msra.mxu0 0.0
      %612 = vmatpush.msra.mxu0 0.0
      %613 = vmatpush.msra.mxu0 0.0
      %614 = vmatpush.msra.mxu0 %v601
      %615 = vmatpush.msra.mxu0 %v600
      %616 = vmatpush.msra.mxu0 %v599
      %617 = vmatpush.msra.mxu0 %v598
      %618 = vmatpush.msra.mxu0 %v597
      %619 = vmatpush.msra.mxu0 %v596
      %620 = vmatpush.msra.mxu0 %v595
      %621 = vmatpush.msra.mxu0 %v594
      %622 = vmatmul.f32.gmra.mxu0 %v604
      %v623 = vpop.f32.mrf.mxu0
      %v624 = vadd.f32 %v602, %v623
      %625 = vdwg.mxu0
      %v626 = vstv %s245
      %v627 = vmul.f32 %v626, %v624
      %629 = vrot.lane.b32.xlu0 %v627, 32
      %v630 = vpop.permute.xlu0 %629
      %v632 = vadd.f32 %v290, %v630
      %v633 = vsel %vm266, %v585, %v632
      %vm634 = vcmask 517120
      %635 = vst.msk [vmem:[#allocation2] sm:$0x3] %vm634, %v633
      %v636 = vadd.f32 %v559, 0.0
      %v637 = vperm.slane %v291, 5
      %639 = vrot.lane.b32.xlu0 %v637, 32
      %v640 = vpop.permute.xlu0 %639
      %v642 = vadd.f32 %v636, %v640
      %s643 = scalar_lea.vmem [#allocation2], 2
      %v644 = vld [vmem:[%s643] sm:$0x3]
      %s645 = scalar_lea.vmem %s5, 8
      %v646 = vld [vmem:[%s645] sm:$0xff]
      %648 = vrot.lane.b32.xlu0 %v642, 96
      %v649 = vpop.permute.xlu0 %648
      %v651 = vsub.f32 %v288, %v649
      %653 = vrot.lane.b32.xlu0 %v644, 32
      %v654 = vpop.permute.xlu0 %653
      %v656 = vsel %vm266, %v651, %v654
      %s657 = scalar_lea.vmem %s3, 192
      %v658 = vld [vmem:[%s657] sm:$0xff]
      %v659 = vld [vmem:[%s657 + $0x8] sm:$0xff]
      %v660 = vld [vmem:[%s657 + $0x10] sm:$0xff]
      %v661 = vld [vmem:[%s657 + $0x18] sm:$0xff]
      %v662 = vld [vmem:[%s657 + $0x20] sm:$0xff]
      %v663 = vld [vmem:[%s657 + $0x28] sm:$0xff]
      %v664 = vld [vmem:[%s657 + $0x30] sm:$0xff]
      %v665 = vld [vmem:[%s657 + $0x38] sm:$0xff]
      %v666 = vld [vmem:[%s657 + $0x40] sm:$0xff]
      %v667 = vld [vmem:[%s657 + $0x48] sm:$0xff]
      %v668 = vld [vmem:[%s657 + $0x50] sm:$0xff]
      %v669 = vld [vmem:[%s657 + $0x58] sm:$0xff]
      %v670 = vperm.slane %v646, 0
      %v672 = vsel %vm310, %v656, 0
      %674 = vmatpush.msra.mxu0 0.0
      %675 = vmatpush.msra.mxu0 0.0
      %676 = vmatpush.msra.mxu0 0.0
      %677 = vmatpush.msra.mxu0 0.0
      %678 = vmatpush.msra.mxu0 %v669
      %679 = vmatpush.msra.mxu0 %v668
      %680 = vmatpush.msra.mxu0 %v667
      %681 = vmatpush.msra.mxu0 %v666
      %682 = vmatpush.msra.mxu0 %v665
      %683 = vmatpush.msra.mxu0 %v664
      %684 = vmatpush.msra.mxu0 %v663
      %685 = vmatpush.msra.mxu0 %v662
      %686 = vmatpush.msra.mxu0 %v661
      %687 = vmatpush.msra.mxu0 %v660
      %688 = vmatpush.msra.mxu0 %v659
      %689 = vmatpush.msra.mxu0 %v658
      %690 = vmatmul.f32.gmra.mxu0 %v672
      %v691 = vpop.f32.mrf.mxu0
      %v692 = vadd.f32 %v670, %v691
      %693 = vdwg.mxu0
      %v694 = vand.u32 2147483647, %v692
      %vm695 = vcmp.le.f32.partialorder %v694, 0.7853982
      %vm696 = vcmp.lt.s32.totalorder %v692, 0
      %v697 = vand.u32 %v692, 2139095040
      %v698 = vshrl.u32 %v697, 23
      %v699 = vsub.s32 %v698, 127
      %v700 = vand.u32 2147483647, %v692
      %v701 = vand.u32 %v700, 8388607
      %v702 = vor.u32 %v701, 8388608
      %v703 = vsub.s32 0, %v702
      %v704 = vadd.s32 %v699, 1
      %vm705 = vcmp.gt.s32.totalorder %v704, 0
      %v706 = vsel %vm705, %v704, 0
      %v707 = vshrl.u32 %v706, 5
      %v708 = vand.u32 %v706, 31
      %v709 = vsub.s32 32, %v708
      %v710 = vshrl.u32 683565275, %v709
      %v711 = vshll.u32 683565275, %v708
      %v712 = vshrl.u32 2475754826, %v709
      %v713 = vor.u32 %v711, %v712
      %v714 = vshll.u32 2475754826, %v708
      %v715 = vshrl.u32 2131351028, %v709
      %v716 = vor.u32 %v714, %v715
      %v717 = vshll.u32 2131351028, %v708
      %v718 = vshrl.u32 2102212464, %v709
      %v719 = vor.u32 %v717, %v718
      %v720 = vshll.u32 2102212464, %v708
      %v721 = vshrl.u32 920167782, %v709
      %v722 = vor.u32 %v720, %v721
      %v723 = vshll.u32 920167782, %v708
      %v724 = vshrl.u32 1326507024, %v709
      %v725 = vor.u32 %v723, %v724
      %vm726 = vcmp.lt.s32.totalorder %v707, 1
      %vm727 = vcmp.lt.s32.totalorder %v707, 2
      %vm728 = vcmp.lt.s32.totalorder %v707, 3
      %vm729 = vcmp.lt.s32.totalorder %v707, 4
      %v730 = vsel %vm726, %v710, %v713
      %v731 = vsel %vm729, %v719, 2102212464
      %v732 = vsel %vm728, %v716, %v731
      %v733 = vsel %vm727, %v730, %v732
      %v734 = vsel %vm726, %v713, %v716
      %v735 = vsel %vm729, %v722, 920167782
      %v736 = vsel %vm728, %v719, %v735
      %v737 = vsel %vm727, %v734, %v736
      %v738 = vsel %vm726, %v716, %v719
      %v739 = vsel %vm729, %v725, 1326507024
      %v740 = vsel %vm728, %v722, %v739
      %v741 = vsel %vm727, %v738, %v740
      %v742 = vshll.u32 %v702, 8
      %v743 = vand.u32 %v742, 65535
      %v744 = vshrl.u32 %v742, 16
      %v745 = vand.u32 %v741, 65535
      %v746 = vshrl.u32 %v741, 16
      %v747 = vmul.u32 %v743, %v745
      %v748 = vmul.u32 %v743, %v746
      %v749 = vmul.u32 %v744, %v745
      %v750 = vmul.u32 %v744, %v746
      %v751 = vshll.u32 %v748, 16
      %v752 = vshrl.u32 %v748, 16
      %v753 = vshll.u32 %v749, 16
      %v754 = vshrl.u32 %v749, 16
      %vm755 = vc.u32 %v747, %v751
      %v756 = vsel %vm755, 1, 0
      %v757 = vadd.s32 %v747, %v751
      %v758 = vadd.s32 %v750, %v756
      %vm759 = vc.u32 %v757, %v753
      %v760 = vsel %vm759, 1, 0
      %v761 = vadd.s32 %v757, %v753
      %v762 = vadd.s32 %v758, %v760
      %v763 = vadd.s32 %v762, %v752
      %v764 = vadd.s32 %v763, %v754
      %v765 = vand.u32 %v742, 65535
      %v766 = vshrl.u32 %v742, 16
      %v767 = vand.u32 %v737, 65535
      %v768 = vshrl.u32 %v737, 16
      %v769 = vmul.u32 %v765, %v767
      %v770 = vmul.u32 %v765, %v768
      %v771 = vmul.u32 %v766, %v767
      %v772 = vmul.u32 %v766, %v768
      %v773 = vshll.u32 %v770, 16
      %v774 = vshrl.u32 %v770, 16
      %v775 = vshll.u32 %v771, 16
      %v776 = vshrl.u32 %v771, 16
      %vm777 = vc.u32 %v769, %v773
      %v778 = vsel %vm777, 1, 0
      %v779 = vadd.s32 %v769, %v773
      %v780 = vadd.s32 %v772, %v778
      %vm781 = vc.u32 %v779, %v775
      %v782 = vsel %vm781, 1, 0
      %v783 = vadd.s32 %v779, %v775
      %v784 = vadd.s32 %v780, %v782
      %v785 = vadd.s32 %v784, %v774
      %v786 = vadd.s32 %v785, %v776
      %v787 = vmul.u32 %v742, %v733
      %v788 = vadd.s32 %v764, %v783
      %vm789 = vc.u32 %v764, %v783
      %v790 = vadd.s32 %v786, 1
      %v791 = vsel %vm789, %v790, %v786
      %v792 = vadd.s32 %v787, %v791
      %v793 = vadd.s32 %v792, 536870912
      %v794 = vshrl.u32 %v793, 30
      %v795 = vshll.u32 %v794, 30
      %v796 = vsub.s32 %v792, %v795
      %vm797 = vcmp.lt.s32.totalorder %v796, 0
      %v798 = vsub.s32 0, %v796
      %v799 = vsel %vm797, %v798, %v796
      %v800 = vclz %v799
      %v801 = vsub.s32 %v800, 2
      %vm802 = vcmp.gt.s32.totalorder 0, %v801
      %v803 = vsel %vm802, 0, %v801
      %v804 = vsub.s32 32, %v803
      %v805 = vshll.u32 %v796, %v803
      %v806 = vshrl.u32 %v788, %v804
      %v807 = vor.u32 %v805, %v806
      %v808 = vsub.s32 4294967266, %v803
      %v809 = vadd.s32 %v808, 127
      %v810 = vshll.u32 %v809, 23
      %v811 = vor.u32 4788187, %v810
      %v812 = vand.u32 2147483647, %v811
      %v814 = vcvt.s32.f32 %v807
      %v815 = vmul.f32 %v814, %v812
      %v816 = vxor.u32 %v815, 2147483648
      %v817 = vsel %vm696, %v816, %v815
      %v818 = vsub.s32 4, %v794
      %v819 = vsel %vm696, %v818, %v794
      %v820 = vsel %vm695, %v692, %v817
      %v821 = vsel %vm695, 0, %v819
      %v822 = vmul.f32 %v820, %v820
      %v823 = vmul.f32 %v822, -0.001358992
      %v824 = vadd.f32 %v823, 0.041655596
      %v825 = vmul.f32 %v822, %v824
      %v826 = vadd.f32 %v825, -0.4999988
      %v827 = vmul.f32 %v822, %v826
      %v828 = vadd.f32 1.0, %v827
      %v829 = vmul.f32 %v820, %v820
      %v830 = vmul.f32 %v829, -0.00019511016
      %v831 = vadd.f32 %v830, 0.008332121
      %v832 = vmul.f32 %v829, %v831
      %v833 = vadd.f32 %v832, -0.16666654
      %v834 = vmul.f32 %v829, %v833
      %v835 = vadd.f32 %v834, 1.0
      %v836 = vmul.f32 %v835, %v820
      %vm837 = vweird.f32 %v692
      %v838 = vand.u32 %v821, 3
      %vm839 = vcmp.lt.s32.totalorder %v838, 2
      %vm840 = vcmp.eq.s32.totalorder %v838, 0
      %v841 = vxor.u32 %v836, 2147483648
      %v842 = vsel %vm840, %v828, %v841
      %vm843 = vcmp.eq.s32.totalorder %v838, 2
      %v844 = vxor.u32 %v828, 2147483648
      %v845 = vsel %vm843, %v844, %v836
      %v846 = vsel %vm839, %v842, %v845
      %v847 = vsel %vm837, nan, %v846
      %v848 = vperm.slane %v646, 2
      %v849 = vmul.f32 %v848, %v847
      %v850 = vperm.slane %v646, 1
      %v851 = vadd.f32 %v850, %v849
      %v852 = vmul.f32 %v847, %v847
      %v853 = vperm.slane %v646, 3
      %v854 = vmul.f32 %v853, %v852
      %v855 = vadd.f32 %v851, %v854
      %v856 = vld [vmem:[%s657 + $0x60] sm:$0xff]
      %v857 = vld [vmem:[%s657 + $0x68] sm:$0xff]
      %v858 = vld [vmem:[%s657 + $0x70] sm:$0xff]
      %v859 = vld [vmem:[%s657 + $0x78] sm:$0xff]
      %v861 = vsel %vm266, %v855, 0
      %863 = vmatpush.msra.mxu0 0.0
      %864 = vmatpush.msra.mxu0 0.0
      %865 = vmatpush.msra.mxu0 0.0
      %866 = vmatpush.msra.mxu0 0.0
      %867 = vmatpush.msra.mxu0 0.0
      %868 = vmatpush.msra.mxu0 0.0
      %869 = vmatpush.msra.mxu0 0.0
      %870 = vmatpush.msra.mxu0 0.0
      %871 = vmatpush.msra.mxu0 0.0
      %872 = vmatpush.msra.mxu0 0.0
      %873 = vmatpush.msra.mxu0 0.0
      %874 = vmatpush.msra.mxu0 0.0
      %875 = vmatpush.msra.mxu0 %v859
      %876 = vmatpush.msra.mxu0 %v858
      %877 = vmatpush.msra.mxu0 %v857
      %878 = vmatpush.msra.mxu0 %v856
      %879 = vmatmul.f32.gmra.mxu0 %v861
      %v880 = vpop.f32.mrf.mxu0
      %v881 = vadd.f32 0.0, %v880
      %882 = vdwg.mxu0
      %v883 = vmul.f32 %v881, %v881
      %885 = vrot.lane.b32.xlu0 %v883, 32
      %v886 = vpop.permute.xlu0 %885
      %v888 = vsel %vm266, %v881, %v886
      %s889 = scalar_lea.vmem %s4, 64
      %v890 = vld [vmem:[%s889] sm:$0xff]
      %v891 = vld [vmem:[%s889 + $0x8] sm:$0xff]
      %v892 = vld [vmem:[%s889 + $0x10] sm:$0xff]
      %v893 = vld [vmem:[%s889 + $0x18] sm:$0xff]
      %v894 = vld [vmem:[%s889 + $0x20] sm:$0xff]
      %v895 = vld [vmem:[%s889 + $0x28] sm:$0xff]
      %v896 = vld [vmem:[%s889 + $0x30] sm:$0xff]
      %v897 = vld [vmem:[%s889 + $0x38] sm:$0xff]
      %v899 = vsel %vm537, %v888, 0
      %901 = vmatpush.msra.mxu0 0.0
      %902 = vmatpush.msra.mxu0 0.0
      %903 = vmatpush.msra.mxu0 0.0
      %904 = vmatpush.msra.mxu0 0.0
      %905 = vmatpush.msra.mxu0 0.0
      %906 = vmatpush.msra.mxu0 0.0
      %907 = vmatpush.msra.mxu0 0.0
      %908 = vmatpush.msra.mxu0 0.0
      %909 = vmatpush.msra.mxu0 %v897
      %910 = vmatpush.msra.mxu0 %v896
      %911 = vmatpush.msra.mxu0 %v895
      %912 = vmatpush.msra.mxu0 %v894
      %913 = vmatpush.msra.mxu0 %v893
      %914 = vmatpush.msra.mxu0 %v892
      %915 = vmatpush.msra.mxu0 %v891
      %916 = vmatpush.msra.mxu0 %v890
      %917 = vmatmul.f32.gmra.mxu0 %v899
      %v918 = vpop.f32.mrf.mxu0
      %v919 = vadd.f32 0.0, %v918
      %920 = vdwg.mxu0
      %v921 = vmul.f32 %v919, %v919
      %923 = vrot.lane.b32.xlu0 %v921, 64
      %v924 = vpop.permute.xlu0 %923
      %v926 = vsub.f32 %v919, %v924
      %v927 = vsub.f32 %v881, %v919
      %v928 = vadd.f32 %v926, 1e-05
      %v929 = vrsqrt.pop %v928
      %v930 = vmul.f32 %v929, %v928
      %v931 = vmul.f32 %v930, %v929
      %v932 = vmul.f32 0.5, %v931
      %v933 = vsub.f32 1.5, %v932
      %v934 = vmul.f32 %v929, %v933
      %vm935 = vweird.f32 %v928
      %vm936 = vweird.f32 %v929
      %vm937 = vmor %vm935, %vm936
      %v938 = vsel %vm937, %v929, %v934
      %940 = vrot.lane.b32.xlu0 %v938, 64
      %v941 = vpop.permute.xlu0 %940
      %v943 = vmul.f32 %v927, %v941
      %v944 = vperm.slane %v646, 4
      %v945 = vmul.f32 %v943, %v944
      %946 = vrot.lane.b32.xlu0 %v644, 96
      %v947 = vpop.permute.xlu0 %946
      %950 = vrot.lane.b32.xlu0 %v945, 32
      %v951 = vpop.permute.xlu0 %950
      %v953 = vsel %vm266, %v947, %v951
      %v954 = vld [vmem:[%s657 + $0x80] sm:$0xff]
      %v955 = vld [vmem:[%s657 + $0x88] sm:$0xff]
      %v956 = vld [vmem:[%s657 + $0x90] sm:$0xff]
      %v957 = vld [vmem:[%s657 + $0x98] sm:$0xff]
      %v958 = vld [vmem:[%s657 + $0xa0] sm:$0xff]
      %v959 = vld [vmem:[%s657 + $0xa8] sm:$0xff]
      %v960 = vld [vmem:[%s657 + $0xb0] sm:$0xff]
      %v961 = vld [vmem:[%s657 + $0xb8] sm:$0xff]
      %v962 = vperm.slane %v646, 6
      %v964 = vsel %vm537, %v953, 0
      %966 = vmatpush.msra.mxu0 0.0
      %967 = vmatpush.msra.mxu0 0.0
      %968 = vmatpush.msra.mxu0 0.0
      %969 = vmatpush.msra.mxu0 0.0
      %970 = vmatpush.msra.mxu0 0.0
      %971 = vmatpush.msra.mxu0 0.0
      %972 = vmatpush.msra.mxu0 0.0
      %973 = vmatpush.msra.mxu0 0.0
      %974 = vmatpush.msra.mxu0 %v961
      %975 = vmatpush.msra.mxu0 %v960
      %976 = vmatpush.msra.mxu0 %v959
      %977 = vmatpush.msra.mxu0 %v958
      %978 = vmatpush.msra.mxu0 %v957
      %979 = vmatpush.msra.mxu0 %v956
      %980 = vmatpush.msra.mxu0 %v955
      %981 = vmatpush.msra.mxu0 %v954
      %982 = vmatmul.f32.gmra.mxu0 %v964
      %v983 = vpop.f32.mrf.mxu0
      %v984 = vadd.f32 %v962, %v983
      %985 = vdwg.mxu0
      %v986 = vmul.f32 %v626, %v984
      %988 = vrot.lane.b32.xlu0 %v986, 32
      %v989 = vpop.permute.xlu0 %988
      %v991 = vadd.f32 %v644, %v989
      %v992 = vsel %vm266, %v945, %v991
      %993 = vst.msk [vmem:[%s643] sm:$0x3] %vm634, %v992
      %v994 = vadd.f32 %v642, %v919
      %v995 = vperm.slane %v646, 5
      %997 = vrot.lane.b32.xlu0 %v995, 32
      %v998 = vpop.permute.xlu0 %997
      %v1000 = vadd.f32 %v994, %v998
      %v1001 = vld [vmem:[%s5 + $0x7] sm:$0x1]
      %v1002 = vperm.slane %v1001, 0
      %1004 = vrot.lane.b32.xlu0 %v1000, 96
      %v1005 = vpop.permute.xlu0 %1004
      %v1007 = vadd.f32 %v1002, %v1005
      %v1008 = vadd.f32 %v1007, %v288
      %v1009 = vand.u32 2147483647, %v1008
      %vm1010 = vcmp.le.f32.partialorder %v1009, 0.7853982
      %vm1011 = vcmp.lt.s32.totalorder %v1008, 0
      %v1012 = vand.u32 %v1008, 2139095040
      %v1013 = vshrl.u32 %v1012, 23
      %v1014 = vsub.s32 %v1013, 127
      %v1015 = vand.u32 2147483647, %v1008
      %v1016 = vand.u32 %v1015, 8388607
      %v1017 = vor.u32 %v1016, 8388608
      %v1018 = vsub.s32 0, %v1017
      %v1019 = vadd.s32 %v1014, 1
      %vm1020 = vcmp.gt.s32.totalorder %v1019, 0
      %v1021 = vsel %vm1020, %v1019, 0
      %v1022 = vshrl.u32 %v1021, 5
      %v1023 = vand.u32 %v1021, 31
      %v1024 = vsub.s32 32, %v1023
      %v1025 = vshrl.u32 683565275, %v1024
      %v1026 = vshll.u32 683565275, %v1023
      %v1027 = vshrl.u32 2475754826, %v1024
      %v1028 = vor.u32 %v1026, %v1027
      %v1029 = vshll.u32 2475754826, %v1023
      %v1030 = vshrl.u32 2131351028, %v1024
      %v1031 = vor.u32 %v1029, %v1030
      %v1032 = vshll.u32 2131351028, %v1023
      %v1033 = vshrl.u32 2102212464, %v1024
      %v1034 = vor.u32 %v1032, %v1033
      %v1035 = vshll.u32 2102212464, %v1023
      %v1036 = vshrl.u32 920167782, %v1024
      %v1037 = vor.u32 %v1035, %v1036
      %v1038 = vshll.u32 920167782, %v1023
      %v1039 = vshrl.u32 1326507024, %v1024
      %v1040 = vor.u32 %v1038, %v1039
      %vm1041 = vcmp.lt.s32.totalorder %v1022, 1
      %vm1042 = vcmp.lt.s32.totalorder %v1022, 2
      %vm1043 = vcmp.lt.s32.totalorder %v1022, 3
      %vm1044 = vcmp.lt.s32.totalorder %v1022, 4
      %v1045 = vsel %vm1041, %v1025, %v1028
      %v1046 = vsel %vm1044, %v1034, 2102212464
      %v1047 = vsel %vm1043, %v1031, %v1046
      %v1048 = vsel %vm1042, %v1045, %v1047
      %v1049 = vsel %vm1041, %v1028, %v1031
      %v1050 = vsel %vm1044, %v1037, 920167782
      %v1051 = vsel %vm1043, %v1034, %v1050
      %v1052 = vsel %vm1042, %v1049, %v1051
      %v1053 = vsel %vm1041, %v1031, %v1034
      %v1054 = vsel %vm1044, %v1040, 1326507024
      %v1055 = vsel %vm1043, %v1037, %v1054
      %v1056 = vsel %vm1042, %v1053, %v1055
      %v1057 = vshll.u32 %v1017, 8
      %v1058 = vand.u32 %v1057, 65535
      %v1059 = vshrl.u32 %v1057, 16
      %v1060 = vand.u32 %v1056, 65535
      %v1061 = vshrl.u32 %v1056, 16
      %v1062 = vmul.u32 %v1058, %v1060
      %v1063 = vmul.u32 %v1058, %v1061
      %v1064 = vmul.u32 %v1059, %v1060
      %v1065 = vmul.u32 %v1059, %v1061
      %v1066 = vshll.u32 %v1063, 16
      %v1067 = vshrl.u32 %v1063, 16
      %v1068 = vshll.u32 %v1064, 16
      %v1069 = vshrl.u32 %v1064, 16
      %vm1070 = vc.u32 %v1062, %v1066
      %v1071 = vsel %vm1070, 1, 0
      %v1072 = vadd.s32 %v1062, %v1066
      %v1073 = vadd.s32 %v1065, %v1071
      %vm1074 = vc.u32 %v1072, %v1068
      %v1075 = vsel %vm1074, 1, 0
      %v1076 = vadd.s32 %v1072, %v1068
      %v1077 = vadd.s32 %v1073, %v1075
      %v1078 = vadd.s32 %v1077, %v1067
      %v1079 = vadd.s32 %v1078, %v1069
      %v1080 = vand.u32 %v1057, 65535
      %v1081 = vshrl.u32 %v1057, 16
      %v1082 = vand.u32 %v1052, 65535
      %v1083 = vshrl.u32 %v1052, 16
      %v1084 = vmul.u32 %v1080, %v1082
      %v1085 = vmul.u32 %v1080, %v1083
      %v1086 = vmul.u32 %v1081, %v1082
      %v1087 = vmul.u32 %v1081, %v1083
      %v1088 = vshll.u32 %v1085, 16
      %v1089 = vshrl.u32 %v1085, 16
      %v1090 = vshll.u32 %v1086, 16
      %v1091 = vshrl.u32 %v1086, 16
      %vm1092 = vc.u32 %v1084, %v1088
      %v1093 = vsel %vm1092, 1, 0
      %v1094 = vadd.s32 %v1084, %v1088
      %v1095 = vadd.s32 %v1087, %v1093
      %vm1096 = vc.u32 %v1094, %v1090
      %v1097 = vsel %vm1096, 1, 0
      %v1098 = vadd.s32 %v1094, %v1090
      %v1099 = vadd.s32 %v1095, %v1097
      %v1100 = vadd.s32 %v1099, %v1089
      %v1101 = vadd.s32 %v1100, %v1091
      %v1102 = vmul.u32 %v1057, %v1048
      %v1103 = vadd.s32 %v1079, %v1098
      %vm1104 = vc.u32 %v1079, %v1098
      %v1105 = vadd.s32 %v1101, 1
      %v1106 = vsel %vm1104, %v1105, %v1101
      %v1107 = vadd.s32 %v1102, %v1106
      %v1108 = vadd.s32 %v1107, 536870912
      %v1109 = vshrl.u32 %v1108, 30
      %v1110 = vshll.u32 %v1109, 30
      %v1111 = vsub.s32 %v1107, %v1110
      %vm1112 = vcmp.lt.s32.totalorder %v1111, 0
      %v1113 = vsub.s32 0, %v1111
      %v1114 = vsel %vm1112, %v1113, %v1111
      %v1115 = vclz %v1114
      %v1116 = vsub.s32 %v1115, 2
      %vm1117 = vcmp.gt.s32.totalorder 0, %v1116
      %v1118 = vsel %vm1117, 0, %v1116
      %v1119 = vsub.s32 32, %v1118
      %v1120 = vshll.u32 %v1111, %v1118
      %v1121 = vshrl.u32 %v1103, %v1119
      %v1122 = vor.u32 %v1120, %v1121
      %v1123 = vsub.s32 4294967266, %v1118
      %v1124 = vadd.s32 %v1123, 127
      %v1125 = vshll.u32 %v1124, 23
      %v1126 = vor.u32 4788187, %v1125
      %v1127 = vand.u32 2147483647, %v1126
      %v1129 = vcvt.s32.f32 %v1122
      %v1130 = vmul.f32 %v1129, %v1127
      %v1131 = vxor.u32 %v1130, 2147483648
      %v1132 = vsel %vm1011, %v1131, %v1130
      %v1133 = vsub.s32 4, %v1109
      %v1134 = vsel %vm1011, %v1133, %v1109
      %v1135 = vsel %vm1010, %v1008, %v1132
      %v1136 = vsel %vm1010, 0, %v1134
      %v1137 = vmul.f32 %v1135, %v1135
      %v1138 = vmul.f32 %v1137, -0.001358992
      %v1139 = vadd.f32 %v1138, 0.041655596
      %v1140 = vmul.f32 %v1137, %v1139
      %v1141 = vadd.f32 %v1140, -0.4999988
      %v1142 = vmul.f32 %v1137, %v1141
      %v1143 = vadd.f32 1.0, %v1142
      %v1144 = vmul.f32 %v1135, %v1135
      %v1145 = vmul.f32 %v1144, -0.00019511016
      %v1146 = vadd.f32 %v1145, 0.008332121
      %v1147 = vmul.f32 %v1144, %v1146
      %v1148 = vadd.f32 %v1147, -0.16666654
      %v1149 = vmul.f32 %v1144, %v1148
      %v1150 = vadd.f32 %v1149, 1.0
      %v1151 = vmul.f32 %v1150, %v1135
      %vm1152 = vweird.f32 %v1008
      %v1153 = vand.u32 %v1136, 3
      %vm1154 = vcmp.lt.s32.totalorder %v1153, 2
      %vm1155 = vcmp.eq.s32.totalorder %v1153, 0
      %v1156 = vxor.u32 %v1151, 2147483648
      %v1157 = vsel %vm1155, %v1143, %v1156
      %vm1158 = vcmp.eq.s32.totalorder %v1153, 2
      %v1159 = vxor.u32 %v1143, 2147483648
      %v1160 = vsel %vm1158, %v1159, %v1151
      %v1161 = vsel %vm1154, %v1157, %v1160
      %v1162 = vsel %vm1152, nan, %v1161
      %v1163 = vand.u32 2147483647, %v1008
      %vm1164 = vcmp.le.f32.partialorder %v1163, 0.7853982
      %vm1165 = vcmp.lt.s32.totalorder %v1008, 0
      %v1166 = vand.u32 %v1008, 2139095040
      %v1167 = vshrl.u32 %v1166, 23
      %v1168 = vsub.s32 %v1167, 127
      %v1169 = vand.u32 2147483647, %v1008
      %v1170 = vand.u32 %v1169, 8388607
      %v1171 = vor.u32 %v1170, 8388608
      %v1172 = vsub.s32 0, %v1171
      %v1173 = vadd.s32 %v1168, 1
      %vm1174 = vcmp.gt.s32.totalorder %v1173, 0
      %v1175 = vsel %vm1174, %v1173, 0
      %v1176 = vshrl.u32 %v1175, 5
      %v1177 = vand.u32 %v1175, 31
      %v1178 = vsub.s32 32, %v1177
      %v1179 = vshrl.u32 683565275, %v1178
      %v1180 = vshll.u32 683565275, %v1177
      %v1181 = vshrl.u32 2475754826, %v1178
      %v1182 = vor.u32 %v1180, %v1181
      %v1183 = vshll.u32 2475754826, %v1177
      %v1184 = vshrl.u32 2131351028, %v1178
      %v1185 = vor.u32 %v1183, %v1184
      %v1186 = vshll.u32 2131351028, %v1177
      %v1187 = vshrl.u32 2102212464, %v1178
      %v1188 = vor.u32 %v1186, %v1187
      %v1189 = vshll.u32 2102212464, %v1177
      %v1190 = vshrl.u32 920167782, %v1178
      %v1191 = vor.u32 %v1189, %v1190
      %v1192 = vshll.u32 920167782, %v1177
      %v1193 = vshrl.u32 1326507024, %v1178
      %v1194 = vor.u32 %v1192, %v1193
      %vm1195 = vcmp.lt.s32.totalorder %v1176, 1
      %vm1196 = vcmp.lt.s32.totalorder %v1176, 2
      %vm1197 = vcmp.lt.s32.totalorder %v1176, 3
      %vm1198 = vcmp.lt.s32.totalorder %v1176, 4
      %v1199 = vsel %vm1195, %v1179, %v1182
      %v1200 = vsel %vm1198, %v1188, 2102212464
      %v1201 = vsel %vm1197, %v1185, %v1200
      %v1202 = vsel %vm1196, %v1199, %v1201
      %v1203 = vsel %vm1195, %v1182, %v1185
      %v1204 = vsel %vm1198, %v1191, 920167782
      %v1205 = vsel %vm1197, %v1188, %v1204
      %v1206 = vsel %vm1196, %v1203, %v1205
      %v1207 = vsel %vm1195, %v1185, %v1188
      %v1208 = vsel %vm1198, %v1194, 1326507024
      %v1209 = vsel %vm1197, %v1191, %v1208
      %v1210 = vsel %vm1196, %v1207, %v1209
      %v1211 = vshll.u32 %v1171, 8
      %v1212 = vand.u32 %v1211, 65535
      %v1213 = vshrl.u32 %v1211, 16
      %v1214 = vand.u32 %v1210, 65535
      %v1215 = vshrl.u32 %v1210, 16
      %v1216 = vmul.u32 %v1212, %v1214
      %v1217 = vmul.u32 %v1212, %v1215
      %v1218 = vmul.u32 %v1213, %v1214
      %v1219 = vmul.u32 %v1213, %v1215
      %v1220 = vshll.u32 %v1217, 16
      %v1221 = vshrl.u32 %v1217, 16
      %v1222 = vshll.u32 %v1218, 16
      %v1223 = vshrl.u32 %v1218, 16
      %vm1224 = vc.u32 %v1216, %v1220
      %v1225 = vsel %vm1224, 1, 0
      %v1226 = vadd.s32 %v1216, %v1220
      %v1227 = vadd.s32 %v1219, %v1225
      %vm1228 = vc.u32 %v1226, %v1222
      %v1229 = vsel %vm1228, 1, 0
      %v1230 = vadd.s32 %v1226, %v1222
      %v1231 = vadd.s32 %v1227, %v1229
      %v1232 = vadd.s32 %v1231, %v1221
      %v1233 = vadd.s32 %v1232, %v1223
      %v1234 = vand.u32 %v1211, 65535
      %v1235 = vshrl.u32 %v1211, 16
      %v1236 = vand.u32 %v1206, 65535
      %v1237 = vshrl.u32 %v1206, 16
      %v1238 = vmul.u32 %v1234, %v1236
      %v1239 = vmul.u32 %v1234, %v1237
      %v1240 = vmul.u32 %v1235, %v1236
      %v1241 = vmul.u32 %v1235, %v1237
      %v1242 = vshll.u32 %v1239, 16
      %v1243 = vshrl.u32 %v1239, 16
      %v1244 = vshll.u32 %v1240, 16
      %v1245 = vshrl.u32 %v1240, 16
      %vm1246 = vc.u32 %v1238, %v1242
      %v1247 = vsel %vm1246, 1, 0
      %v1248 = vadd.s32 %v1238, %v1242
      %v1249 = vadd.s32 %v1241, %v1247
      %vm1250 = vc.u32 %v1248, %v1244
      %v1251 = vsel %vm1250, 1, 0
      %v1252 = vadd.s32 %v1248, %v1244
      %v1253 = vadd.s32 %v1249, %v1251
      %v1254 = vadd.s32 %v1253, %v1243
      %v1255 = vadd.s32 %v1254, %v1245
      %v1256 = vmul.u32 %v1211, %v1202
      %v1257 = vadd.s32 %v1233, %v1252
      %vm1258 = vc.u32 %v1233, %v1252
      %v1259 = vadd.s32 %v1255, 1
      %v1260 = vsel %vm1258, %v1259, %v1255
      %v1261 = vadd.s32 %v1256, %v1260
      %v1262 = vadd.s32 %v1261, 536870912
      %v1263 = vshrl.u32 %v1262, 30
      %v1264 = vshll.u32 %v1263, 30
      %v1265 = vsub.s32 %v1261, %v1264
      %vm1266 = vcmp.lt.s32.totalorder %v1265, 0
      %v1267 = vsub.s32 0, %v1265
      %v1268 = vsel %vm1266, %v1267, %v1265
      %v1269 = vclz %v1268
      %v1270 = vsub.s32 %v1269, 2
      %vm1271 = vcmp.gt.s32.totalorder 0, %v1270
      %v1272 = vsel %vm1271, 0, %v1270
      %v1273 = vsub.s32 32, %v1272
      %v1274 = vshll.u32 %v1265, %v1272
      %v1275 = vshrl.u32 %v1257, %v1273
      %v1276 = vor.u32 %v1274, %v1275
      %v1277 = vsub.s32 4294967266, %v1272
      %v1278 = vadd.s32 %v1277, 127
      %v1279 = vshll.u32 %v1278, 23
      %v1280 = vor.u32 4788187, %v1279
      %v1281 = vand.u32 2147483647, %v1280
      %v1283 = vcvt.s32.f32 %v1276
      %v1284 = vmul.f32 %v1283, %v1281
      %v1285 = vxor.u32 %v1284, 2147483648
      %v1286 = vsel %vm1165, %v1285, %v1284
      %v1287 = vsub.s32 4, %v1263
      %v1288 = vsel %vm1165, %v1287, %v1263
      %v1289 = vsel %vm1164, %v1008, %v1286
      %v1290 = vsel %vm1164, 0, %v1288
      %v1291 = vmul.f32 %v1289, %v1289
      %v1292 = vmul.f32 %v1291, -0.001358992
      %v1293 = vadd.f32 %v1292, 0.041655596
      %v1294 = vmul.f32 %v1291, %v1293
      %v1295 = vadd.f32 %v1294, -0.4999988
      %v1296 = vmul.f32 %v1291, %v1295
      %v1297 = vadd.f32 1.0, %v1296
      %v1298 = vmul.f32 %v1289, %v1289
      %v1299 = vmul.f32 %v1298, -0.00019511016
      %v1300 = vadd.f32 %v1299, 0.008332121
      %v1301 = vmul.f32 %v1298, %v1300
      %v1302 = vadd.f32 %v1301, -0.16666654
      %v1303 = vmul.f32 %v1298, %v1302
      %v1304 = vadd.f32 %v1303, 1.0
      %v1305 = vmul.f32 %v1304, %v1289
      %vm1306 = vweird.f32 %v1008
      %v1307 = vadd.s32 %v1290, 3
      %v1308 = vand.u32 %v1307, 3
      %vm1309 = vcmp.lt.s32.totalorder %v1308, 2
      %vm1310 = vcmp.eq.s32.totalorder %v1308, 0
      %v1311 = vxor.u32 %v1305, 2147483648
      %v1312 = vsel %vm1310, %v1297, %v1311
      %vm1313 = vcmp.eq.s32.totalorder %v1308, 2
      %v1314 = vxor.u32 %v1297, 2147483648
      %v1315 = vsel %vm1313, %v1314, %v1305
      %v1316 = vsel %vm1309, %v1312, %v1315
      %v1317 = vsel %vm1306, nan, %v1316
      %1319 = vrot.lane.b32.xlu0 %v1162, 32
      %v1320 = vpop.permute.xlu0 %1319
      %v1322 = vmul.f32 %v288, %v1320
      %1324 = vrot.lane.b32.xlu0 %v1317, 64
      %v1325 = vpop.permute.xlu0 %1324
      %v1327 = vmul.f32 %v288, %v1325
      %1329 = vrot.lane.b32.xlu0 %v1327, 96
      %v1330 = vpop.permute.xlu0 %1329
      %v1332 = vsub.f32 %v1322, %v1330
      %1333 = vrot.lane.b32.xlu0 %v1317, 32
      %v1334 = vpop.permute.xlu0 %1333
      %v1336 = vmul.f32 %v288, %v1334
      %1337 = vrot.lane.b32.xlu0 %v1162, 64
      %v1338 = vpop.permute.xlu0 %1337
      %v1340 = vmul.f32 %v288, %v1338
      %1342 = vrot.lane.b32.xlu0 %v1340, 96
      %v1343 = vpop.permute.xlu0 %1342
      %v1345 = vadd.f32 %v1336, %v1343
      %1347 = vrot.lane.b32.xlu0 %v1332, 96
      %v1348 = vpop.permute.xlu0 %1347
      %1351 = vrot.lane.b32.xlu0 %v633, 64
      %v1352 = vpop.permute.xlu0 %1351
      %v1354 = vsel %vm266, %v1348, %v1345
      %v1355 = vsel %vm537, %v1354, %v1352
      %v1356 = vsel %vm537, %v992, 0.0
      %v1359 = vrot.slane %v1356, 6
      %vm1360 = vcmask 1041408
      %v1361 = vsel %vm1360, %v1355, %v1359
      %1363 = vst [vmem:[%s219] sm:$0xf] %v1361
      %p1364 = scmp.lt.s32.totalorder %s31, 7
      %s1365 = scalar_select %p1364, %s31, 7
      %s1366 = smul.addr %s1365, 2
      %s1367 = smul.addr %s1366, 2
      %s1368 = scalar_lea.vmem %s7, %s1367
      // Predicated region
      $region45: #{rotator_forward_seq.1} parent=39 // pred_check
        %p1369 = pneg %p154
      $region46: #{rotator_forward_seq.1} parent=39 // pred_check_branch
        %1371 = sbr.rel (%p1369) target = $region48
      $region47: #{rotator_forward_seq.1} parent=39 // pred_region
        _
      $region48: #{rotator_forward_seq.1} parent=39 // pred_fallthru
        _
    $region40: #{rotator_forward_seq.1} parent=5 // pred_fallthru
      _
    %p1372 = scmp.le.s32.totalorder 2, %s26
    // Predicated region
    $region49: #{rotator_forward_seq.1} parent=5 // pred_check
      %p1373 = pneg %p1372
    $region50: #{rotator_forward_seq.1} parent=5 // pred_check_branch
      %1375 = sbr.rel (%p1373) target = $region52
    $region51: #{rotator_forward_seq.1} parent=5 // pred_region
      %s1376 = ssub.s32 %s26, 2
      // Predicated region
      $region53: #{rotator_forward_seq.1} parent=51 // pred_check
        %p1377 = pneg %p160
      $region54: #{rotator_forward_seq.1} parent=51 // pred_check_branch
        %1379 = sbr.rel (%p1377) target = $region56
      $region55: #{rotator_forward_seq.1} parent=51 // pred_region
        %p1380 = scmp.lt.s32.totalorder %s32, 7
        %s1381 = scalar_select %p1380, %s32, 7
        %s1382 = smul.addr %s1381, 2
        %s1383 = smul.addr %s1382, 2
        %s1384 = scalar_lea.vmem %s7, %s1383
      $region56: #{rotator_forward_seq.1} parent=51 // pred_fallthru
        _
    $region52: #{rotator_forward_seq.1} parent=5 // pred_fallthru
      _
  $region6: #{rotator_forward_seq.1} parent=0 // loop_footer
    %s30 = sadd.s32 1, %s26
  $region7: #{rotator_forward_seq.1} parent=0 // loop_footer_branch
    %25 = sbr.rel target = $region3
  $region8: #{rotator_forward_seq.1} parent=0 // loop_exit
    _

</llo_original>
